<compile_context>
chip_gen: v5e
topology: v5e:2x2
jax: 0.10.0
libtpu: 0.0.40
codegen_flags: <defaults>
</compile_context>

<pallas_src>
import functools

import jax
import jax.numpy as jnp
from jax import lax
from jax.experimental import pallas as pl
from jax.experimental.pallas import tpu as pltpu


def _detect_kernel(x_ref, w_ref, b_ref, whm_ref, raw_ref, y_ref, *,
                   stride, nx, na, tm):
    # x_ref   : (1, C, TM)  spatial tile of one image, channels as sublanes
    # w_ref   : (N, C)      1x1-conv weight, rows in k-major (attribute) order
    # b_ref   : (N, 1)      conv bias (same row order)
    # whm_ref : (N, 1)      4*anchor_w / 4*anchor_h on wh rows, 1.0 elsewhere
    # raw_ref : (1, N, TM)  pre-sigmoid conv output (torch's returned x[i])
    # y_ref   : (1, N, TM)  decoded detections
    t = pl.program_id(1)

    x = x_ref[0]                                      # (C, TM)
    w = w_ref[...]                                    # (N, C)
    raw = jnp.dot(w, x, preferred_element_type=jnp.float32) + b_ref[...]
    raw_ref[0] = raw.astype(raw_ref.dtype)

    # sigmoid(x) == 0.5 * tanh(0.5 * x) + 0.5   (single EUP op, no divide)
    sig = 0.5 * jnp.tanh(0.5 * raw) + 0.5

    # Grid-cell coordinates for this spatial tile, generated in-kernel.
    lane = lax.broadcasted_iota(jnp.int32, (1, tm), 1).astype(jnp.float32)
    col = lane + (t * tm).astype(jnp.float32)         # flat spatial index
    gy = jnp.floor(col / nx)                          # exact (no recip trick)
    gx = col - gy * nx
    gxoff = gx * stride - 0.5 * stride                # (g - 0.5) * stride
    gyoff = gy * stride - 0.5 * stride

    # Per-row (sublane) masks; rows are k-major: [x]*na, [y]*na, [w]*na,
    # [h]*na, then obj/class rows.
    row = lax.broadcasted_iota(jnp.int32, (raw.shape[0], 1), 0)
    is_x = row < na
    is_xy = row < 2 * na
    is_wh = jnp.logical_and(row >= 2 * na, row < 4 * na)

    goff = jnp.where(is_x, gxoff, gyoff)              # (N, TM)
    xyv = sig * (2.0 * stride) + goff
    whv = sig * sig * whm_ref[...]
    y = jnp.where(is_xy, xyv, jnp.where(is_wh, whv, sig))
    y_ref[0] = y.astype(y_ref.dtype)


def _choose_spatial_tile(s, c, n, vmem_budget=12 * 1024 * 1024):
    """Largest lane-aligned tile dividing s whose double-buffered working set
    (input (C,tm) + 2 outputs (N,tm), f32, x2 buffers) fits the budget."""
    for cand in (2048, 1024, 512, 256, 128):
        if s % cand == 0 and (c + 2 * n) * cand * 4 * 2 <= vmem_budget:
            return cand
    return s  # full extent (allowed by the (8,128) rule)


def detect_level(x_nchw, weight, bias, anchors_lvl, stride, no, na):
    """One pyramid level: 1x1 conv + sigmoid box decode (inference mode)."""
    bs, C, ny, nx = x_nchw.shape
    N = na * no
    S = ny * nx

    # NCHW is already (channels, spatial)-major: flattening is free.
    x3 = x_nchw.reshape(bs, C, S)

    # Permute conv output channels from anchor-major (a*no + k) to
    # attribute-major (k*na + a) so decode masks are contiguous row ranges.
    j = jnp.arange(N)
    perm = (j % na) * no + (j // na)
    w_km = weight.reshape(N, C)[perm]                 # (N, C)
    b_km = bias[perm].reshape(N, 1)

    whm4 = jnp.ones((N, 1), jnp.float32)
    whm4 = whm4.at[2 * na:3 * na, 0].set(4.0 * anchors_lvl[:, 0])
    whm4 = whm4.at[3 * na:4 * na, 0].set(4.0 * anchors_lvl[:, 1])

    tm = _choose_spatial_tile(S, C, N)
    kernel = functools.partial(_detect_kernel, stride=float(stride),
                               nx=float(nx), na=na, tm=tm)

    raw, y = pl.pallas_call(
        kernel,
        out_shape=(jax.ShapeDtypeStruct((bs, N, S), jnp.float32),
                   jax.ShapeDtypeStruct((bs, N, S), jnp.float32)),
        grid=(bs, S // tm),
        in_specs=[
            pl.BlockSpec((1, C, tm), lambda b, t: (b, 0, t)),
            pl.BlockSpec((N, C), lambda b, t: (0, 0)),
            pl.BlockSpec((N, 1), lambda b, t: (0, 0)),
            pl.BlockSpec((N, 1), lambda b, t: (0, 0)),
        ],
        out_specs=(pl.BlockSpec((1, N, tm), lambda b, t: (b, 0, t)),
                   pl.BlockSpec((1, N, tm), lambda b, t: (b, 0, t))),
        compiler_params=pltpu.CompilerParams(
            dimension_semantics=("parallel", "parallel")),
    )(x3, w_km, b_km, whm4)

    # Undo k-major ordering; reshape back to torch semantics.
    # raw[b, k*na + a, y*nx + x]  ->  (bs, na, ny, nx, no)
    raw5 = raw.reshape(bs, no, na, ny, nx).transpose(0, 2, 3, 4, 1)
    y5 = y.reshape(bs, no, na, ny, nx).transpose(0, 2, 3, 4, 1)
    z = y5.reshape(bs, na * ny * nx, no)
    return raw5, z


def detect_forward(xs, weights, biases, anchors, strides, nc):
    """Equivalent of Detect.forward in eval mode: returns (cat(z,1), x_list)."""
    no = nc + 5
    na = anchors.shape[1]
    outs, zs = [], []
    for i, x in enumerate(xs):
        r, z = detect_level(x, weights[i], biases[i], anchors[i], strides[i],
                            no, na)
        outs.append(r)
        zs.append(z)
    return jnp.concatenate(zs, axis=1), outs


# jit the whole forward so the per-level reshape/transpose/concat glue fuses
# and dispatch overhead vanishes; strides tuple and nc are compile-time.
detect_forward_jit = jax.jit(detect_forward, static_argnums=(4, 5))


# ---------------- pure-JAX reference (for verification) ----------------
def detect_reference(xs, weights, biases, anchors, strides, nc):
    no = nc + 5
    na = anchors.shape[1]
    outs, zs = [], []
    for i, x in enumerate(xs):
        bs, C, ny, nx = x.shape
        w = weights[i].reshape(na * no, C)
        conv = jnp.einsum('bchw,oc->bohw', x, w) + biases[i][None, :, None, None]
        xi = (conv.reshape(bs, na, no, ny * nx)
                  .transpose(0, 1, 3, 2)
                  .reshape(bs, na, ny, nx, no))
        outs.append(xi)
        yy, xx = jnp.meshgrid(jnp.arange(ny), jnp.arange(nx), indexing='ij')
        grid = jnp.stack((xx, yy), 2).reshape(1, 1, ny, nx, 2).astype(jnp.float32)
        y = jax.nn.sigmoid(xi)
        xy = (y[..., 0:2] * 2.0 - 0.5 + grid) * strides[i]
        wh = (y[..., 2:4] * 2.0) ** 2 * anchors[i].reshape(1, na, 1, 1, 2)
        y = jnp.concatenate([xy, wh, y[..., 4:]], axis=-1)
        zs.append(y.reshape(bs, -1, no))
    return jnp.concatenate(zs, axis=1), outs


if __name__ == "__main__":
    key = jax.random.PRNGKey(0)

    # Module config (small, but consistent with Detect.__init__):
    nc = 13
    no = nc + 5                       # 18
    anchors_list = [[3, 9, 5, 11, 4, 20],
                    [7, 18, 6, 39, 12, 31],
                    [19, 50, 38, 81, 68, 157]]
    anchors = jnp.asarray(anchors_list, dtype=jnp.float32).reshape(3, 3, 2)
    na = anchors.shape[1]             # 3
    nl = anchors.shape[0]             # 3
    ch = (4, 8, 16)
    strides = (8.0, 16.0, 32.0)

    bs = 2
    spatial = [(16, 16), (8, 8), (4, 4)]

    # Deterministic parameters + inputs.
    keys = jax.random.split(key, 3 * nl)
    weights, biases, xs = [], [], []
    for i in range(nl):
        weights.append(0.1 * jax.random.normal(keys[3 * i + 0],
                                               (na * no, ch[i]), jnp.float32))
        biases.append(0.1 * jax.random.normal(keys[3 * i + 1],
                                              (na * no,), jnp.float32))
        ny, nx = spatial[i]
        xs.append(jax.random.normal(keys[3 * i + 2],
                                    (bs, ch[i], ny, nx), jnp.float32))

    z, x_out = detect_forward_jit(xs, weights, biases, anchors, strides, nc)
    z = jax.block_until_ready(z)
    x_out = [jax.block_until_ready(a) for a in x_out]

    z_ref, x_ref = detect_reference(xs, weights, biases, anchors, strides, nc)
    assert z.shape == (bs, na * sum(h * w for h, w in spatial), no), z.shape
    assert jnp.allclose(z, z_ref, atol=1e-4, rtol=1e-4)
    for a, b in zip(x_out, x_ref):
        assert a.shape == b.shape
        assert jnp.allclose(a, b, atol=1e-4, rtol=1e-4)

    print("KERNEL_OK")
</pallas_src>

<mosaic_0001>
module attributes {stable_mosaic.version = 11 : i64} {
  func.func @_detect_kernel(%arg0: i32, %arg1: i32, %arg2: memref<1x4x256xf32, #tpu.memory_space<vmem>>, %arg3: memref<54x4xf32, #tpu.memory_space<vmem>>, %arg4: memref<54x1xf32, #tpu.memory_space<vmem>>, %arg5: memref<54x1xf32, #tpu.memory_space<vmem>>, %arg6: memref<1x54x256xf32, #tpu.memory_space<vmem>>, %arg7: memref<1x54x256xf32, #tpu.memory_space<vmem>>) attributes {dimension_semantics = [#tpu.dimension_semantics<parallel>, #tpu.dimension_semantics<parallel>], iteration_bounds = array<i64: 2, 1>, scalar_prefetch = 0 : i64, scratch_operands = 0 : i64, tpu.core_type = #tpu.core_type<tc>, window_params = [{transform_indices = @transform_0, window_bounds = array<i64: 1, 4, 256>}, {pipeline_mode = #tpu.pipeline_mode<synchronous>, transform_indices = @transform_1, window_bounds = array<i64: 54, 4>}, {pipeline_mode = #tpu.pipeline_mode<synchronous>, transform_indices = @transform_2, window_bounds = array<i64: 54, 1>}, {pipeline_mode = #tpu.pipeline_mode<synchronous>, transform_indices = @transform_3, window_bounds = array<i64: 54, 1>}, {transform_indices = @transform_4, window_bounds = array<i64: 1, 54, 256>}, {transform_indices = @transform_5, window_bounds = array<i64: 1, 54, 256>}]} {
    %c0 = arith.constant 0 : index
    %c0_0 = arith.constant 0 : index
    %c0_1 = arith.constant 0 : index
    %0 = vector.load %arg2[%c0, %c0_0, %c0_1] : memref<1x4x256xf32, #tpu.memory_space<vmem>>, vector<1x4x256xf32>
    %1 = vector.shape_cast %0 : vector<1x4x256xf32> to vector<4x256xf32>
    %c0_2 = arith.constant 0 : index
    %c0_3 = arith.constant 0 : index
    %2 = vector.load %arg3[%c0_2, %c0_3] : memref<54x4xf32, #tpu.memory_space<vmem>>, vector<54x4xf32>
    %cst = arith.constant dense<0.000000e+00> : vector<54x256xf32>
    %3 = tpu.matmul %2, %1, %cst {dimension_numbers = #tpu.dot_dimension_numbers<[1], [0], [0], [1], [0, 0, 1, 1], [], []>} : vector<54x4xf32>, vector<4x256xf32>, vector<54x256xf32> -> vector<54x256xf32>
    %c0_4 = arith.constant 0 : index
    %c0_5 = arith.constant 0 : index
    %4 = vector.load %arg4[%c0_4, %c0_5] : memref<54x1xf32, #tpu.memory_space<vmem>>, vector<54x1xf32>
    %5 = vector.broadcast %4 : vector<54x1xf32> to vector<54x256xf32>
    %6 = arith.addf %3, %5 : vector<54x256xf32>
    %c0_6 = arith.constant 0 : index
    %c0_7 = arith.constant 0 : index
    %c0_8 = arith.constant 0 : index
    %7 = vector.load %arg6[%c0_6, %c0_7, %c0_8] : memref<1x54x256xf32, #tpu.memory_space<vmem>>, vector<1x54x256xf32>
    %8 = vector.shape_cast %7 : vector<1x54x256xf32> to vector<54x256xf32>
    %9 = vector.shape_cast %6 : vector<54x256xf32> to vector<1x54x256xf32>
    tpu.vector_store %arg6[%c0_6, %c0_7, %c0_8], %9 {strides = array<i32>} : memref<1x54x256xf32, #tpu.memory_space<vmem>>, vector<1x54x256xf32>,
    %cst_9 = arith.constant 5.000000e-01 : f32
    %10 = vector.broadcast %cst_9 : f32 to vector<54x256xf32>
    %11 = arith.mulf %10, %6 : vector<54x256xf32>
    %12 = math.tanh %11 : vector<54x256xf32>
    %cst_10 = arith.constant 5.000000e-01 : f32
    %13 = vector.broadcast %cst_10 : f32 to vector<54x256xf32>
    %14 = arith.mulf %13, %12 : vector<54x256xf32>
    %cst_11 = arith.constant 5.000000e-01 : f32
    %15 = vector.broadcast %cst_11 : f32 to vector<54x256xf32>
    %16 = arith.addf %14, %15 : vector<54x256xf32>
    %17 = tpu.iota {dimensions = array<i32: 1>} : vector<1x256xi32>
    %18 = arith.sitofp %17 : vector<1x256xi32> to vector<1x256xf32>
    %c256_i32 = arith.constant 256 : i32
    %19 = arith.muli %arg1, %c256_i32 : i32
    %20 = arith.sitofp %19 : i32 to f32
    %21 = vector.broadcast %20 : f32 to vector<1x256xf32>
    %22 = arith.addf %18, %21 : vector<1x256xf32>
    %cst_12 = arith.constant 1.600000e+01 : f32
    %23 = vector.broadcast %cst_12 : f32 to vector<1x256xf32>
    %24 = arith.divf %22, %23 : vector<1x256xf32>
    %25 = math.floor %24 : vector<1x256xf32>
    %cst_13 = arith.constant 1.600000e+01 : f32
    %26 = vector.broadcast %cst_13 : f32 to vector<1x256xf32>
    %27 = arith.mulf %25, %26 : vector<1x256xf32>
    %28 = arith.subf %22, %27 : vector<1x256xf32>
    %cst_14 = arith.constant 8.000000e+00 : f32
    %29 = vector.broadcast %cst_14 : f32 to vector<1x256xf32>
    %30 = arith.mulf %28, %29 : vector<1x256xf32>
    %cst_15 = arith.constant 4.000000e+00 : f32
    %31 = vector.broadcast %cst_15 : f32 to vector<1x256xf32>
    %32 = arith.subf %30, %31 : vector<1x256xf32>
    %cst_16 = arith.constant 8.000000e+00 : f32
    %33 = vector.broadcast %cst_16 : f32 to vector<1x256xf32>
    %34 = arith.mulf %25, %33 : vector<1x256xf32>
    %cst_17 = arith.constant 4.000000e+00 : f32
    %35 = vector.broadcast %cst_17 : f32 to vector<1x256xf32>
    %36 = arith.subf %34, %35 : vector<1x256xf32>
    %37 = tpu.iota {dimensions = array<i32: 0>} : vector<54x1xi32>
    %c3_i32 = arith.constant 3 : i32
    %38 = vector.broadcast %c3_i32 : i32 to vector<54x1xi32>
    %39 = arith.cmpi slt, %37, %38 : vector<54x1xi32>
    %c6_i32 = arith.constant 6 : i32
    %40 = vector.broadcast %c6_i32 : i32 to vector<54x1xi32>
    %41 = arith.cmpi slt, %37, %40 : vector<54x1xi32>
    %c6_i32_18 = arith.constant 6 : i32
    %42 = vector.broadcast %c6_i32_18 : i32 to vector<54x1xi32>
    %43 = arith.cmpi sge, %37, %42 : vector<54x1xi32>
    %c12_i32 = arith.constant 12 : i32
    %44 = vector.broadcast %c12_i32 : i32 to vector<54x1xi32>
    %45 = arith.cmpi slt, %37, %44 : vector<54x1xi32>
    %46 = arith.andi %43, %45 : vector<54x1xi1>
    %47 = vector.shape_cast %39 : vector<54x1xi1> to vector<54x1xi1>
    %48 = vector.broadcast %47 : vector<54x1xi1> to vector<54x256xi1>
    %49 = vector.shape_cast %32 : vector<1x256xf32> to vector<1x256xf32>
    %50 = vector.broadcast %49 : vector<1x256xf32> to vector<54x256xf32>
    %51 = vector.shape_cast %36 : vector<1x256xf32> to vector<1x256xf32>
    %52 = vector.broadcast %51 : vector<1x256xf32> to vector<54x256xf32>
    %53 = arith.select %48, %50, %52 : vector<54x256xi1>, vector<54x256xf32>
    %cst_19 = arith.constant 1.600000e+01 : f32
    %54 = vector.broadcast %cst_19 : f32 to vector<54x256xf32>
    %55 = arith.mulf %16, %54 : vector<54x256xf32>
    %56 = arith.addf %55, %53 : vector<54x256xf32>
    %57 = arith.mulf %16, %16 : vector<54x256xf32>
    %c0_20 = arith.constant 0 : index
    %c0_21 = arith.constant 0 : index
    %58 = vector.load %arg5[%c0_20, %c0_21] : memref<54x1xf32, #tpu.memory_space<vmem>>, vector<54x1xf32>
    %59 = vector.broadcast %58 : vector<54x1xf32> to vector<54x256xf32>
    %60 = arith.mulf %57, %59 : vector<54x256xf32>
    %61 = vector.shape_cast %46 : vector<54x1xi1> to vector<54x1xi1>
    %62 = vector.broadcast %61 : vector<54x1xi1> to vector<54x256xi1>
    %63 = arith.select %62, %60, %16 : vector<54x256xi1>, vector<54x256xf32>
    %64 = vector.shape_cast %41 : vector<54x1xi1> to vector<54x1xi1>
    %65 = vector.broadcast %64 : vector<54x1xi1> to vector<54x256xi1>
    %66 = arith.select %65, %56, %63 : vector<54x256xi1>, vector<54x256xf32>
    %c0_22 = arith.constant 0 : index
    %c0_23 = arith.constant 0 : index
    %c0_24 = arith.constant 0 : index
    %67 = vector.load %arg7[%c0_22, %c0_23, %c0_24] : memref<1x54x256xf32, #tpu.memory_space<vmem>>, vector<1x54x256xf32>
    %68 = vector.shape_cast %67 : vector<1x54x256xf32> to vector<54x256xf32>
    %69 = vector.shape_cast %66 : vector<54x256xf32> to vector<1x54x256xf32>
    tpu.vector_store %arg7[%c0_22, %c0_23, %c0_24], %69 {strides = array<i32>} : memref<1x54x256xf32, #tpu.memory_space<vmem>>, vector<1x54x256xf32>,
    return
  }
  func.func @transform_0(%arg0: i32, %arg1: i32) -> (i32, i32, i32) {
    %c0_i32 = arith.constant 0 : i32
    %c0_i32_0 = arith.constant 0 : i32
    return %arg0, %c0_i32, %arg1 : i32, i32, i32
  }
  func.func @transform_1(%arg0: i32, %arg1: i32) -> (i32, i32) {
    %c0_i32 = arith.constant 0 : i32
    %c0_i32_0 = arith.constant 0 : i32
    %c0_i32_1 = arith.constant 0 : i32
    return %c0_i32, %c0_i32_0 : i32, i32
  }
  func.func @transform_2(%arg0: i32, %arg1: i32) -> (i32, i32) {
    %c0_i32 = arith.constant 0 : i32
    %c0_i32_0 = arith.constant 0 : i32
    %c0_i32_1 = arith.constant 0 : i32
    return %c0_i32, %c0_i32_0 : i32, i32
  }
  func.func @transform_3(%arg0: i32, %arg1: i32) -> (i32, i32) {
    %c0_i32 = arith.constant 0 : i32
    %c0_i32_0 = arith.constant 0 : i32
    %c0_i32_1 = arith.constant 0 : i32
    return %c0_i32, %c0_i32_0 : i32, i32
  }
  func.func @transform_4(%arg0: i32, %arg1: i32) -> (i32, i32, i32) {
    %c0_i32 = arith.constant 0 : i32
    %c0_i32_0 = arith.constant 0 : i32
    return %arg0, %c0_i32, %arg1 : i32, i32, i32
  }
  func.func @transform_5(%arg0: i32, %arg1: i32) -> (i32, i32, i32) {
    %c0_i32 = arith.constant 0 : i32
    %c0_i32_0 = arith.constant 0 : i32
    return %arg0, %c0_i32, %arg1 : i32, i32, i32
  }
}

module attributes {stable_mosaic.version = 11 : i64} {
  func.func @_detect_kernel(%arg0: i32, %arg1: i32, %arg2: memref<1x8x64xf32, #tpu.memory_space<vmem>>, %arg3: memref<54x8xf32, #tpu.memory_space<vmem>>, %arg4: memref<54x1xf32, #tpu.memory_space<vmem>>, %arg5: memref<54x1xf32, #tpu.memory_space<vmem>>, %arg6: memref<1x54x64xf32, #tpu.memory_space<vmem>>, %arg7: memref<1x54x64xf32, #tpu.memory_space<vmem>>) attributes {dimension_semantics = [#tpu.dimension_semantics<parallel>, #tpu.dimension_semantics<parallel>], iteration_bounds = array<i64: 2, 1>, scalar_prefetch = 0 : i64, scratch_operands = 0 : i64, tpu.core_type = #tpu.core_type<tc>, window_params = [{transform_indices = @transform_0, window_bounds = array<i64: 1, 8, 64>}, {pipeline_mode = #tpu.pipeline_mode<synchronous>, transform_indices = @transform_1, window_bounds = array<i64: 54, 8>}, {pipeline_mode = #tpu.pipeline_mode<synchronous>, transform_indices = @transform_2, window_bounds = array<i64: 54, 1>}, {pipeline_mode = #tpu.pipeline_mode<synchronous>, transform_indices = @transform_3, window_bounds = array<i64: 54, 1>}, {transform_indices = @transform_4, window_bounds = array<i64: 1, 54, 64>}, {transform_indices = @transform_5, window_bounds = array<i64: 1, 54, 64>}]} {
    %c0 = arith.constant 0 : index
    %c0_0 = arith.constant 0 : index
    %c0_1 = arith.constant 0 : index
    %0 = vector.load %arg2[%c0, %c0_0, %c0_1] : memref<1x8x64xf32, #tpu.memory_space<vmem>>, vector<1x8x64xf32>
    %1 = vector.shape_cast %0 : vector<1x8x64xf32> to vector<8x64xf32>
    %c0_2 = arith.constant 0 : index
    %c0_3 = arith.constant 0 : index
    %2 = vector.load %arg3[%c0_2, %c0_3] : memref<54x8xf32, #tpu.memory_space<vmem>>, vector<54x8xf32>
    %cst = arith.constant dense<0.000000e+00> : vector<54x64xf32>
    %3 = tpu.matmul %2, %1, %cst {dimension_numbers = #tpu.dot_dimension_numbers<[1], [0], [0], [1], [0, 0, 1, 1], [], []>} : vector<54x8xf32>, vector<8x64xf32>, vector<54x64xf32> -> vector<54x64xf32>
    %c0_4 = arith.constant 0 : index
    %c0_5 = arith.constant 0 : index
    %4 = vector.load %arg4[%c0_4, %c0_5] : memref<54x1xf32, #tpu.memory_space<vmem>>, vector<54x1xf32>
    %5 = vector.broadcast %4 : vector<54x1xf32> to vector<54x64xf32>
    %6 = arith.addf %3, %5 : vector<54x64xf32>
    %c0_6 = arith.constant 0 : index
    %c0_7 = arith.constant 0 : index
    %c0_8 = arith.constant 0 : index
    %7 = vector.load %arg6[%c0_6, %c0_7, %c0_8] : memref<1x54x64xf32, #tpu.memory_space<vmem>>, vector<1x54x64xf32>
    %8 = vector.shape_cast %7 : vector<1x54x64xf32> to vector<54x64xf32>
    %9 = vector.shape_cast %6 : vector<54x64xf32> to vector<1x54x64xf32>
    tpu.vector_store %arg6[%c0_6, %c0_7, %c0_8], %9 {strides = array<i32>} : memref<1x54x64xf32, #tpu.memory_space<vmem>>, vector<1x54x64xf32>,
    %cst_9 = arith.constant 5.000000e-01 : f32
    %10 = vector.broadcast %cst_9 : f32 to vector<54x64xf32>
    %11 = arith.mulf %10, %6 : vector<54x64xf32>
    %12 = math.tanh %11 : vector<54x64xf32>
    %cst_10 = arith.constant 5.000000e-01 : f32
    %13 = vector.broadcast %cst_10 : f32 to vector<54x64xf32>
    %14 = arith.mulf %13, %12 : vector<54x64xf32>
    %cst_11 = arith.constant 5.000000e-01 : f32
    %15 = vector.broadcast %cst_11 : f32 to vector<54x64xf32>
    %16 = arith.addf %14, %15 : vector<54x64xf32>
    %17 = tpu.iota {dimensions = array<i32: 1>} : vector<1x64xi32>
    %18 = arith.sitofp %17 : vector<1x64xi32> to vector<1x64xf32>
    %c64_i32 = arith.constant 64 : i32
    %19 = arith.muli %arg1, %c64_i32 : i32
    %20 = arith.sitofp %19 : i32 to f32
    %21 = vector.broadcast %20 : f32 to vector<1x64xf32>
    %22 = arith.addf %18, %21 : vector<1x64xf32>
    %cst_12 = arith.constant 8.000000e+00 : f32
    %23 = vector.broadcast %cst_12 : f32 to vector<1x64xf32>
    %24 = arith.divf %22, %23 : vector<1x64xf32>
    %25 = math.floor %24 : vector<1x64xf32>
    %cst_13 = arith.constant 8.000000e+00 : f32
    %26 = vector.broadcast %cst_13 : f32 to vector<1x64xf32>
    %27 = arith.mulf %25, %26 : vector<1x64xf32>
    %28 = arith.subf %22, %27 : vector<1x64xf32>
    %cst_14 = arith.constant 1.600000e+01 : f32
    %29 = vector.broadcast %cst_14 : f32 to vector<1x64xf32>
    %30 = arith.mulf %28, %29 : vector<1x64xf32>
    %cst_15 = arith.constant 8.000000e+00 : f32
    %31 = vector.broadcast %cst_15 : f32 to vector<1x64xf32>
    %32 = arith.subf %30, %31 : vector<1x64xf32>
    %cst_16 = arith.constant 1.600000e+01 : f32
    %33 = vector.broadcast %cst_16 : f32 to vector<1x64xf32>
    %34 = arith.mulf %25, %33 : vector<1x64xf32>
    %cst_17 = arith.constant 8.000000e+00 : f32
    %35 = vector.broadcast %cst_17 : f32 to vector<1x64xf32>
    %36 = arith.subf %34, %35 : vector<1x64xf32>
    %37 = tpu.iota {dimensions = array<i32: 0>} : vector<54x1xi32>
    %c3_i32 = arith.constant 3 : i32
    %38 = vector.broadcast %c3_i32 : i32 to vector<54x1xi32>
    %39 = arith.cmpi slt, %37, %38 : vector<54x1xi32>
    %c6_i32 = arith.constant 6 : i32
    %40 = vector.broadcast %c6_i32 : i32 to vector<54x1xi32>
    %41 = arith.cmpi slt, %37, %40 : vector<54x1xi32>
    %c6_i32_18 = arith.constant 6 : i32
    %42 = vector.broadcast %c6_i32_18 : i32 to vector<54x1xi32>
    %43 = arith.cmpi sge, %37, %42 : vector<54x1xi32>
    %c12_i32 = arith.constant 12 : i32
    %44 = vector.broadcast %c12_i32 : i32 to vector<54x1xi32>
    %45 = arith.cmpi slt, %37, %44 : vector<54x1xi32>
    %46 = arith.andi %43, %45 : vector<54x1xi1>
    %47 = vector.shape_cast %39 : vector<54x1xi1> to vector<54x1xi1>
    %48 = vector.broadcast %47 : vector<54x1xi1> to vector<54x64xi1>
    %49 = vector.shape_cast %32 : vector<1x64xf32> to vector<1x64xf32>
    %50 = vector.broadcast %49 : vector<1x64xf32> to vector<54x64xf32>
    %51 = vector.shape_cast %36 : vector<1x64xf32> to vector<1x64xf32>
    %52 = vector.broadcast %51 : vector<1x64xf32> to vector<54x64xf32>
    %53 = arith.select %48, %50, %52 : vector<54x64xi1>, vector<54x64xf32>
    %cst_19 = arith.constant 3.200000e+01 : f32
    %54 = vector.broadcast %cst_19 : f32 to vector<54x64xf32>
    %55 = arith.mulf %16, %54 : vector<54x64xf32>
    %56 = arith.addf %55, %53 : vector<54x64xf32>
    %57 = arith.mulf %16, %16 : vector<54x64xf32>
    %c0_20 = arith.constant 0 : index
    %c0_21 = arith.constant 0 : index
    %58 = vector.load %arg5[%c0_20, %c0_21] : memref<54x1xf32, #tpu.memory_space<vmem>>, vector<54x1xf32>
    %59 = vector.broadcast %58 : vector<54x1xf32> to vector<54x64xf32>
    %60 = arith.mulf %57, %59 : vector<54x64xf32>
    %61 = vector.shape_cast %46 : vector<54x1xi1> to vector<54x1xi1>
    %62 = vector.broadcast %61 : vector<54x1xi1> to vector<54x64xi1>
    %63 = arith.select %62, %60, %16 : vector<54x64xi1>, vector<54x64xf32>
    %64 = vector.shape_cast %41 : vector<54x1xi1> to vector<54x1xi1>
    %65 = vector.broadcast %64 : vector<54x1xi1> to vector<54x64xi1>
    %66 = arith.select %65, %56, %63 : vector<54x64xi1>, vector<54x64xf32>
    %c0_22 = arith.constant 0 : index
    %c0_23 = arith.constant 0 : index
    %c0_24 = arith.constant 0 : index
    %67 = vector.load %arg7[%c0_22, %c0_23, %c0_24] : memref<1x54x64xf32, #tpu.memory_space<vmem>>, vector<1x54x64xf32>
    %68 = vector.shape_cast %67 : vector<1x54x64xf32> to vector<54x64xf32>
    %69 = vector.shape_cast %66 : vector<54x64xf32> to vector<1x54x64xf32>
    tpu.vector_store %arg7[%c0_22, %c0_23, %c0_24], %69 {strides = array<i32>} : memref<1x54x64xf32, #tpu.memory_space<vmem>>, vector<1x54x64xf32>,
    return
  }
  func.func @transform_0(%arg0: i32, %arg1: i32) -> (i32, i32, i32) {
    %c0_i32 = arith.constant 0 : i32
    %c0_i32_0 = arith.constant 0 : i32
    return %arg0, %c0_i32, %arg1 : i32, i32, i32
  }
  func.func @transform_1(%arg0: i32, %arg1: i32) -> (i32, i32) {
    %c0_i32 = arith.constant 0 : i32
    %c0_i32_0 = arith.constant 0 : i32
    %c0_i32_1 = arith.constant 0 : i32
    return %c0_i32, %c0_i32_0 : i32, i32
  }
  func.func @transform_2(%arg0: i32, %arg1: i32) -> (i32, i32) {
    %c0_i32 = arith.constant 0 : i32
    %c0_i32_0 = arith.constant 0 : i32
    %c0_i32_1 = arith.constant 0 : i32
    return %c0_i32, %c0_i32_0 : i32, i32
  }
  func.func @transform_3(%arg0: i32, %arg1: i32) -> (i32, i32) {
    %c0_i32 = arith.constant 0 : i32
    %c0_i32_0 = arith.constant 0 : i32
    %c0_i32_1 = arith.constant 0 : i32
    return %c0_i32, %c0_i32_0 : i32, i32
  }
  func.func @transform_4(%arg0: i32, %arg1: i32) -> (i32, i32, i32) {
    %c0_i32 = arith.constant 0 : i32
    %c0_i32_0 = arith.constant 0 : i32
    return %arg0, %c0_i32, %arg1 : i32, i32, i32
  }
  func.func @transform_5(%arg0: i32, %arg1: i32) -> (i32, i32, i32) {
    %c0_i32 = arith.constant 0 : i32
    %c0_i32_0 = arith.constant 0 : i32
    return %arg0, %c0_i32, %arg1 : i32, i32, i32
  }
}

module attributes {stable_mosaic.version = 11 : i64} {
  func.func @_detect_kernel(%arg0: i32, %arg1: i32, %arg2: memref<1x16x16xf32, #tpu.memory_space<vmem>>, %arg3: memref<54x16xf32, #tpu.memory_space<vmem>>, %arg4: memref<54x1xf32, #tpu.memory_space<vmem>>, %arg5: memref<54x1xf32, #tpu.memory_space<vmem>>, %arg6: memref<1x54x16xf32, #tpu.memory_space<vmem>>, %arg7: memref<1x54x16xf32, #tpu.memory_space<vmem>>) attributes {dimension_semantics = [#tpu.dimension_semantics<parallel>, #tpu.dimension_semantics<parallel>], iteration_bounds = array<i64: 2, 1>, scalar_prefetch = 0 : i64, scratch_operands = 0 : i64, tpu.core_type = #tpu.core_type<tc>, window_params = [{transform_indices = @transform_0, window_bounds = array<i64: 1, 16, 16>}, {pipeline_mode = #tpu.pipeline_mode<synchronous>, transform_indices = @transform_1, window_bounds = array<i64: 54, 16>}, {pipeline_mode = #tpu.pipeline_mode<synchronous>, transform_indices = @transform_2, window_bounds = array<i64: 54, 1>}, {pipeline_mode = #tpu.pipeline_mode<synchronous>, transform_indices = @transform_3, window_bounds = array<i64: 54, 1>}, {transform_indices = @transform_4, window_bounds = array<i64: 1, 54, 16>}, {transform_indices = @transform_5, window_bounds = array<i64: 1, 54, 16>}]} {
    %c0 = arith.constant 0 : index
    %c0_0 = arith.constant 0 : index
    %c0_1 = arith.constant 0 : index
    %0 = vector.load %arg2[%c0, %c0_0, %c0_1] : memref<1x16x16xf32, #tpu.memory_space<vmem>>, vector<1x16x16xf32>
    %1 = vector.shape_cast %0 : vector<1x16x16xf32> to vector<16x16xf32>
    %c0_2 = arith.constant 0 : index
    %c0_3 = arith.constant 0 : index
    %2 = vector.load %arg3[%c0_2, %c0_3] : memref<54x16xf32, #tpu.memory_space<vmem>>, vector<54x16xf32>
    %cst = arith.constant dense<0.000000e+00> : vector<54x16xf32>
    %3 = tpu.matmul %2, %1, %cst {dimension_numbers = #tpu.dot_dimension_numbers<[1], [0], [0], [1], [0, 0, 1, 1], [], []>} : vector<54x16xf32>, vector<16x16xf32>, vector<54x16xf32> -> vector<54x16xf32>
    %c0_4 = arith.constant 0 : index
    %c0_5 = arith.constant 0 : index
    %4 = vector.load %arg4[%c0_4, %c0_5] : memref<54x1xf32, #tpu.memory_space<vmem>>, vector<54x1xf32>
    %5 = vector.broadcast %4 : vector<54x1xf32> to vector<54x16xf32>
    %6 = arith.addf %3, %5 : vector<54x16xf32>
    %c0_6 = arith.constant 0 : index
    %c0_7 = arith.constant 0 : index
    %c0_8 = arith.constant 0 : index
    %7 = vector.load %arg6[%c0_6, %c0_7, %c0_8] : memref<1x54x16xf32, #tpu.memory_space<vmem>>, vector<1x54x16xf32>
    %8 = vector.shape_cast %7 : vector<1x54x16xf32> to vector<54x16xf32>
    %9 = vector.shape_cast %6 : vector<54x16xf32> to vector<1x54x16xf32>
    tpu.vector_store %arg6[%c0_6, %c0_7, %c0_8], %9 {strides = array<i32>} : memref<1x54x16xf32, #tpu.memory_space<vmem>>, vector<1x54x16xf32>,
    %cst_9 = arith.constant 5.000000e-01 : f32
    %10 = vector.broadcast %cst_9 : f32 to vector<54x16xf32>
    %11 = arith.mulf %10, %6 : vector<54x16xf32>
    %12 = math.tanh %11 : vector<54x16xf32>
    %cst_10 = arith.constant 5.000000e-01 : f32
    %13 = vector.broadcast %cst_10 : f32 to vector<54x16xf32>
    %14 = arith.mulf %13, %12 : vector<54x16xf32>
    %cst_11 = arith.constant 5.000000e-01 : f32
    %15 = vector.broadcast %cst_11 : f32 to vector<54x16xf32>
    %16 = arith.addf %14, %15 : vector<54x16xf32>
    %17 = tpu.iota {dimensions = array<i32: 1>} : vector<1x16xi32>
    %18 = arith.sitofp %17 : vector<1x16xi32> to vector<1x16xf32>
    %c16_i32 = arith.constant 16 : i32
    %19 = arith.muli %arg1, %c16_i32 : i32
    %20 = arith.sitofp %19 : i32 to f32
    %21 = vector.broadcast %20 : f32 to vector<1x16xf32>
    %22 = arith.addf %18, %21 : vector<1x16xf32>
    %cst_12 = arith.constant 4.000000e+00 : f32
    %23 = vector.broadcast %cst_12 : f32 to vector<1x16xf32>
    %24 = arith.divf %22, %23 : vector<1x16xf32>
    %25 = math.floor %24 : vector<1x16xf32>
    %cst_13 = arith.constant 4.000000e+00 : f32
    %26 = vector.broadcast %cst_13 : f32 to vector<1x16xf32>
    %27 = arith.mulf %25, %26 : vector<1x16xf32>
    %28 = arith.subf %22, %27 : vector<1x16xf32>
    %cst_14 = arith.constant 3.200000e+01 : f32
    %29 = vector.broadcast %cst_14 : f32 to vector<1x16xf32>
    %30 = arith.mulf %28, %29 : vector<1x16xf32>
    %cst_15 = arith.constant 1.600000e+01 : f32
    %31 = vector.broadcast %cst_15 : f32 to vector<1x16xf32>
    %32 = arith.subf %30, %31 : vector<1x16xf32>
    %cst_16 = arith.constant 3.200000e+01 : f32
    %33 = vector.broadcast %cst_16 : f32 to vector<1x16xf32>
    %34 = arith.mulf %25, %33 : vector<1x16xf32>
    %cst_17 = arith.constant 1.600000e+01 : f32
    %35 = vector.broadcast %cst_17 : f32 to vector<1x16xf32>
    %36 = arith.subf %34, %35 : vector<1x16xf32>
    %37 = tpu.iota {dimensions = array<i32: 0>} : vector<54x1xi32>
    %c3_i32 = arith.constant 3 : i32
    %38 = vector.broadcast %c3_i32 : i32 to vector<54x1xi32>
    %39 = arith.cmpi slt, %37, %38 : vector<54x1xi32>
    %c6_i32 = arith.constant 6 : i32
    %40 = vector.broadcast %c6_i32 : i32 to vector<54x1xi32>
    %41 = arith.cmpi slt, %37, %40 : vector<54x1xi32>
    %c6_i32_18 = arith.constant 6 : i32
    %42 = vector.broadcast %c6_i32_18 : i32 to vector<54x1xi32>
    %43 = arith.cmpi sge, %37, %42 : vector<54x1xi32>
    %c12_i32 = arith.constant 12 : i32
    %44 = vector.broadcast %c12_i32 : i32 to vector<54x1xi32>
    %45 = arith.cmpi slt, %37, %44 : vector<54x1xi32>
    %46 = arith.andi %43, %45 : vector<54x1xi1>
    %47 = vector.shape_cast %39 : vector<54x1xi1> to vector<54x1xi1>
    %48 = vector.broadcast %47 : vector<54x1xi1> to vector<54x16xi1>
    %49 = vector.shape_cast %32 : vector<1x16xf32> to vector<1x16xf32>
    %50 = vector.broadcast %49 : vector<1x16xf32> to vector<54x16xf32>
    %51 = vector.shape_cast %36 : vector<1x16xf32> to vector<1x16xf32>
    %52 = vector.broadcast %51 : vector<1x16xf32> to vector<54x16xf32>
    %53 = arith.select %48, %50, %52 : vector<54x16xi1>, vector<54x16xf32>
    %cst_19 = arith.constant 6.400000e+01 : f32
    %54 = vector.broadcast %cst_19 : f32 to vector<54x16xf32>
    %55 = arith.mulf %16, %54 : vector<54x16xf32>
    %56 = arith.addf %55, %53 : vector<54x16xf32>
    %57 = arith.mulf %16, %16 : vector<54x16xf32>
    %c0_20 = arith.constant 0 : index
    %c0_21 = arith.constant 0 : index
    %58 = vector.load %arg5[%c0_20, %c0_21] : memref<54x1xf32, #tpu.memory_space<vmem>>, vector<54x1xf32>
    %59 = vector.broadcast %58 : vector<54x1xf32> to vector<54x16xf32>
    %60 = arith.mulf %57, %59 : vector<54x16xf32>
    %61 = vector.shape_cast %46 : vector<54x1xi1> to vector<54x1xi1>
    %62 = vector.broadcast %61 : vector<54x1xi1> to vector<54x16xi1>
    %63 = arith.select %62, %60, %16 : vector<54x16xi1>, vector<54x16xf32>
    %64 = vector.shape_cast %41 : vector<54x1xi1> to vector<54x1xi1>
    %65 = vector.broadcast %64 : vector<54x1xi1> to vector<54x16xi1>
    %66 = arith.select %65, %56, %63 : vector<54x16xi1>, vector<54x16xf32>
    %c0_22 = arith.constant 0 : index
    %c0_23 = arith.constant 0 : index
    %c0_24 = arith.constant 0 : index
    %67 = vector.load %arg7[%c0_22, %c0_23, %c0_24] : memref<1x54x16xf32, #tpu.memory_space<vmem>>, vector<1x54x16xf32>
    %68 = vector.shape_cast %67 : vector<1x54x16xf32> to vector<54x16xf32>
    %69 = vector.shape_cast %66 : vector<54x16xf32> to vector<1x54x16xf32>
    tpu.vector_store %arg7[%c0_22, %c0_23, %c0_24], %69 {strides = array<i32>} : memref<1x54x16xf32, #tpu.memory_space<vmem>>, vector<1x54x16xf32>,
    return
  }
  func.func @transform_0(%arg0: i32, %arg1: i32) -> (i32, i32, i32) {
    %c0_i32 = arith.constant 0 : i32
    %c0_i32_0 = arith.constant 0 : i32
    return %arg0, %c0_i32, %arg1 : i32, i32, i32
  }
  func.func @transform_1(%arg0: i32, %arg1: i32) -> (i32, i32) {
    %c0_i32 = arith.constant 0 : i32
    %c0_i32_0 = arith.constant 0 : i32
    %c0_i32_1 = arith.constant 0 : i32
    return %c0_i32, %c0_i32_0 : i32, i32
  }
  func.func @transform_2(%arg0: i32, %arg1: i32) -> (i32, i32) {
    %c0_i32 = arith.constant 0 : i32
    %c0_i32_0 = arith.constant 0 : i32
    %c0_i32_1 = arith.constant 0 : i32
    return %c0_i32, %c0_i32_0 : i32, i32
  }
  func.func @transform_3(%arg0: i32, %arg1: i32) -> (i32, i32) {
    %c0_i32 = arith.constant 0 : i32
    %c0_i32_0 = arith.constant 0 : i32
    %c0_i32_1 = arith.constant 0 : i32
    return %c0_i32, %c0_i32_0 : i32, i32
  }
  func.func @transform_4(%arg0: i32, %arg1: i32) -> (i32, i32, i32) {
    %c0_i32 = arith.constant 0 : i32
    %c0_i32_0 = arith.constant 0 : i32
    return %arg0, %c0_i32, %arg1 : i32, i32, i32
  }
  func.func @transform_5(%arg0: i32, %arg1: i32) -> (i32, i32, i32) {
    %c0_i32 = arith.constant 0 : i32
    %c0_i32_0 = arith.constant 0 : i32
    return %arg0, %c0_i32, %arg1 : i32, i32, i32
  }
}

</mosaic_0001>

<llo_original>
// kernel: detect_forward.3
$region0: #{detect_forward.3}
  #allocation0 [shape = 'u32[]', space=smem, size = 0x4, offset = 0x4, fixed_abs, tag = 'smem constant byte address 0x4 - core index']
  #allocation1 [shape = 'u32[72,128]{1,0:T(1,128)}', space=vmem, size = 0x9000, scoped, tag = 'internal scratch']
  %s0 = inlined_call_operand.vmem [shape: f32[2,4,256], index: 0, kind: input, shape index: {}]
  %s1 = inlined_call_operand.vmem [shape: f32[54,4], index: 1, kind: input, shape index: {}]
  %s2 = inlined_call_operand.vmem [shape: f32[54,1], index: 2, kind: input, shape index: {}]
  %s3 = inlined_call_operand.vmem [shape: f32[54,1], index: 3, kind: input, shape index: {}]
  %s4 = inlined_call_operand.vmem [shape: f32[2,54,256], index: 4, kind: output, shape index: {0}]
  %s5 = inlined_call_operand.vmem [shape: f32[2,54,256], index: 5, kind: output, shape index: {1}]
  %6 = xla_tuple %s4, %s5
  %s7 = sld [smem:[#allocation0]]
  $region57: #{detect_forward.3} parent=0
    _
  %s9 = ssub.s32 1, %s7
  %s10 = scalar_select 0, %s9, %s7
  loop: start=0, step=1, limit=4
  $region2: #{detect_forward.3} parent=0 // loop_pre_header
    _
  $region3: #{detect_forward.3} parent=0 // loop_header
    %s12 = sphi 0, %s16
    %p13 = scmp.ge.s32.totalorder %s12, 4
    %s19 = sphi 0, %s31
    %s20 = sphi 0, %s27
    %s21 = sphi 0, %s19
    %s22 = sphi 0, %s20
    %s23 = sphi 0, %s21
    %s24 = sphi 0, %s22
    %s36 = sphi 0, %s38
    %s39 = sphi 0, %s36
    %s40 = sphi 0, %s39
    %s56 = sphi 0, %s40
    %s60 = sphi 0, %s60
    %s62 = sphi 0, %s60
    %s63 = sphi 0, %s62
    %s77 = sphi 0, %s63
    %s81 = sphi 0, %s81
    %s83 = sphi 0, %s81
    %s84 = sphi 0, %s83
    %s98 = sphi 0, %s84
    %s102 = sphi 0, %s102
    %s104 = sphi 0, %s102
    %s105 = sphi 0, %s104
    %s119 = sphi 0, %s105
    %s127 = sphi 0, %s129
    %s130 = sphi 0, %s127
    %s131 = sphi 0, %s130
    %s147 = sphi 0, %s131
    %s155 = sphi 0, %s157
    %s158 = sphi 0, %s155
    %s159 = sphi 0, %s158
    %s175 = sphi 0, %s159
  $region4: #{detect_forward.3} parent=0 // loop_header_branch
    %15 = sbr.rel (%p13) target = $region8
  $region5: #{detect_forward.3} parent=0 // loop_body
    %s17 = ssub.s32 %s12, 1
    %s18 = ssub.s32 %s12, 2
    %s25 = sadd.s32 1, %s20
    %p26 = scmp.ge.s32.totalorder %s25, 1
    %s27 = scalar_select %p26, 0, %s25
    %s28 = sadd.s32 1, %s19
    %s29 = scalar_select %p26, %s28, %s19
    %p30 = scmp.ge.s32.totalorder %s29, 2
    %s31 = scalar_select %p30, 0, %s29
    %s32 = ssub.s32 %s19, %s31
    %s33 = ssub.s32 %s20, %s27
    %s34 = sor.u32 %s32, %s33
    %p35 = scmp.eq.s32.totalorder %s34, 0
    %s37 = sadd.s32 %s36, 1
    %s38 = scalar_select %p35, %s36, %s37
    %p41 = pneg %p35
    %p42 = scmp.eq.s32.totalorder %s12, 1
    %p43 = por %p41, %p42
    %p44 = scmp.ne.s32.totalorder %s36, %s39
    %p45 = scmp.eq.s32.totalorder %s12, 0
    %p46 = por %p44, %p45
    %p47 = scmp.ne.s32.totalorder %s36, %s39
    %p48 = scmp.eq.s32.totalorder %s17, 1
    %p49 = por %p47, %p48
    %p50 = scmp.ne.s32.totalorder %s39, %s40
    %p51 = scmp.eq.s32.totalorder %s17, 0
    %p52 = por %p50, %p51
    %p53 = scmp.ne.s32.totalorder %s39, %s40
    %p54 = scmp.eq.s32.totalorder %s18, 1
    %p55 = por %p53, %p54
    %p57 = scmp.ne.s32.totalorder %s40, %s56
    %p58 = scmp.eq.s32.totalorder %s18, 0
    %p59 = por %p57, %p58
    %s61 = sadd.s32 %s60, 1
    %p64 = scmp.eq.s32.totalorder %s12, 1
    %p65 = scmp.ne.s32.totalorder %s60, %s62
    %p66 = scmp.eq.s32.totalorder %s12, 0
    %p67 = por %p65, %p66
    %p68 = scmp.ne.s32.totalorder %s60, %s62
    %p69 = scmp.eq.s32.totalorder %s17, 1
    %p70 = por %p68, %p69
    %p71 = scmp.ne.s32.totalorder %s62, %s63
    %p72 = scmp.eq.s32.totalorder %s17, 0
    %p73 = por %p71, %p72
    %p74 = scmp.ne.s32.totalorder %s62, %s63
    %p75 = scmp.eq.s32.totalorder %s18, 1
    %p76 = por %p74, %p75
    %p78 = scmp.ne.s32.totalorder %s63, %s77
    %p79 = scmp.eq.s32.totalorder %s18, 0
    %p80 = por %p78, %p79
    %s82 = sadd.s32 %s81, 1
    %p85 = scmp.eq.s32.totalorder %s12, 1
    %p86 = scmp.ne.s32.totalorder %s81, %s83
    %p87 = scmp.eq.s32.totalorder %s12, 0
    %p88 = por %p86, %p87
    %p89 = scmp.ne.s32.totalorder %s81, %s83
    %p90 = scmp.eq.s32.totalorder %s17, 1
    %p91 = por %p89, %p90
    %p92 = scmp.ne.s32.totalorder %s83, %s84
    %p93 = scmp.eq.s32.totalorder %s17, 0
    %p94 = por %p92, %p93
    %p95 = scmp.ne.s32.totalorder %s83, %s84
    %p96 = scmp.eq.s32.totalorder %s18, 1
    %p97 = por %p95, %p96
    %p99 = scmp.ne.s32.totalorder %s84, %s98
    %p100 = scmp.eq.s32.totalorder %s18, 0
    %p101 = por %p99, %p100
    %s103 = sadd.s32 %s102, 1
    %p106 = scmp.eq.s32.totalorder %s12, 1
    %p107 = scmp.ne.s32.totalorder %s102, %s104
    %p108 = scmp.eq.s32.totalorder %s12, 0
    %p109 = por %p107, %p108
    %p110 = scmp.ne.s32.totalorder %s102, %s104
    %p111 = scmp.eq.s32.totalorder %s17, 1
    %p112 = por %p110, %p111
    %p113 = scmp.ne.s32.totalorder %s104, %s105
    %p114 = scmp.eq.s32.totalorder %s17, 0
    %p115 = por %p113, %p114
    %p116 = scmp.ne.s32.totalorder %s104, %s105
    %p117 = scmp.eq.s32.totalorder %s18, 1
    %p118 = por %p116, %p117
    %p120 = scmp.ne.s32.totalorder %s105, %s119
    %p121 = scmp.eq.s32.totalorder %s18, 0
    %p122 = por %p120, %p121
    %s123 = ssub.s32 %s19, %s31
    %s124 = ssub.s32 %s20, %s27
    %s125 = sor.u32 %s123, %s124
    %p126 = scmp.eq.s32.totalorder %s125, 0
    %s128 = sadd.s32 %s127, 1
    %s129 = scalar_select %p126, %s127, %s128
    %p132 = pneg %p126
    %p133 = scmp.eq.s32.totalorder %s12, 1
    %p134 = por %p132, %p133
    %p135 = scmp.ne.s32.totalorder %s127, %s130
    %p136 = scmp.eq.s32.totalorder %s12, 0
    %p137 = por %p135, %p136
    %p138 = scmp.ne.s32.totalorder %s127, %s130
    %p139 = scmp.eq.s32.totalorder %s17, 1
    %p140 = por %p138, %p139
    %p141 = scmp.ne.s32.totalorder %s130, %s131
    %p142 = scmp.eq.s32.totalorder %s17, 0
    %p143 = por %p141, %p142
    %p144 = scmp.ne.s32.totalorder %s130, %s131
    %p145 = scmp.eq.s32.totalorder %s18, 1
    %p146 = por %p144, %p145
    %p148 = scmp.ne.s32.totalorder %s131, %s147
    %p149 = scmp.eq.s32.totalorder %s18, 0
    %p150 = por %p148, %p149
    %s151 = ssub.s32 %s19, %s31
    %s152 = ssub.s32 %s20, %s27
    %s153 = sor.u32 %s151, %s152
    %p154 = scmp.eq.s32.totalorder %s153, 0
    %s156 = sadd.s32 %s155, 1
    %s157 = scalar_select %p154, %s155, %s156
    %p160 = pneg %p154
    %p161 = scmp.eq.s32.totalorder %s12, 1
    %p162 = por %p160, %p161
    %p163 = scmp.ne.s32.totalorder %s155, %s158
    %p164 = scmp.eq.s32.totalorder %s12, 0
    %p165 = por %p163, %p164
    %p166 = scmp.ne.s32.totalorder %s155, %s158
    %p167 = scmp.eq.s32.totalorder %s17, 1
    %p168 = por %p166, %p167
    %p169 = scmp.ne.s32.totalorder %s158, %s159
    %p170 = scmp.eq.s32.totalorder %s17, 0
    %p171 = por %p169, %p170
    %p172 = scmp.ne.s32.totalorder %s158, %s159
    %p173 = scmp.eq.s32.totalorder %s18, 1
    %p174 = por %p172, %p173
    %p176 = scmp.ne.s32.totalorder %s159, %s175
    %p177 = scmp.eq.s32.totalorder %s18, 0
    %p178 = por %p176, %p177
    %p179 = scmp.le.s32.totalorder 1, %s12
    %p180 = scmp.lt.s32.totalorder %s12, 3
    %p181 = pnand %p179, %p180
    %p182 = pneg %p181
    // Predicated region
    $region9: #{detect_forward.3} parent=5 // pred_check
      _
    $region10: #{detect_forward.3} parent=5 // pred_check_branch
      %184 = sbr.rel (%p181) target = $region12
    $region11: #{detect_forward.3} parent=5 // pred_region
      %s185 = ssub.s32 %s12, 1
      // Predicated region
      $region13: #{detect_forward.3} parent=11 // pred_check
        %p186 = pneg %p73
      $region14: #{detect_forward.3} parent=11 // pred_check_branch
        %188 = sbr.rel (%p186) target = $region16
      $region15: #{detect_forward.3} parent=11 // pred_region
        _
      $region16: #{detect_forward.3} parent=11 // pred_fallthru
        _
      // Predicated region
      $region17: #{detect_forward.3} parent=11 // pred_check
        %p189 = pneg %p94
      $region18: #{detect_forward.3} parent=11 // pred_check_branch
        %191 = sbr.rel (%p189) target = $region20
      $region19: #{detect_forward.3} parent=11 // pred_region
        _
      $region20: #{detect_forward.3} parent=11 // pred_fallthru
        _
      // Predicated region
      $region21: #{detect_forward.3} parent=11 // pred_check
        %p192 = pneg %p115
      $region22: #{detect_forward.3} parent=11 // pred_check_branch
        %194 = sbr.rel (%p192) target = $region24
      $region23: #{detect_forward.3} parent=11 // pred_region
        _
      $region24: #{detect_forward.3} parent=11 // pred_fallthru
        _
    $region12: #{detect_forward.3} parent=5 // pred_fallthru
      _
    %p195 = scmp.lt.s32.totalorder %s12, 2
    // Predicated region
    $region25: #{detect_forward.3} parent=5 // pred_check
      %p196 = pneg %p195
    $region26: #{detect_forward.3} parent=5 // pred_check_branch
      %198 = sbr.rel (%p196) target = $region28
    $region27: #{detect_forward.3} parent=5 // pred_region
      // Predicated region
      $region29: #{detect_forward.3} parent=27 // pred_check
        %p199 = pneg %p46
      $region30: #{detect_forward.3} parent=27 // pred_check_branch
        %201 = sbr.rel (%p199) target = $region32
      $region31: #{detect_forward.3} parent=27 // pred_region
        %s202 = smul.u32 2, %s20
        %p203 = scmp.lt.s32.totalorder %s19, 1
        %s204 = scalar_select %p203, %s19, 1
        %p205 = scmp.lt.s32.totalorder %s202, 1
        %s206 = scalar_select %p205, %s202, 1
        %s207 = smul.addr %s204, 2
        %s208 = sadd.s32 %s206, %s207
        %s209 = smul.addr %s208, 4
        %s210 = scalar_lea.vmem %s0, %s209
        %s211 = smul.u32 2, %s20
      $region32: #{detect_forward.3} parent=27 // pred_fallthru
        _
    $region28: #{detect_forward.3} parent=5 // pred_fallthru
      _
    %p212 = scmp.le.s32.totalorder 1, %s12
    %p213 = scmp.lt.s32.totalorder %s12, 3
    %p214 = pnand %p212, %p213
    %p215 = pneg %p214
    // Predicated region
    $region33: #{detect_forward.3} parent=5 // pred_check
      _
    $region34: #{detect_forward.3} parent=5 // pred_check_branch
      %217 = sbr.rel (%p214) target = $region36
    $region35: #{detect_forward.3} parent=5 // pred_region
      %s218 = ssub.s32 %s12, 1
      %s219 = smul.u32 2, %s22
      %p220 = scmp.lt.s32.totalorder %s21, 1
      %s221 = scalar_select %p220, %s21, 1
      %p222 = scmp.lt.s32.totalorder %s219, 1
      %s223 = scalar_select %p222, %s219, 1
      %s224 = smul.addr %s221, 2
      %s225 = sadd.s32 %s223, %s224
      %s226 = smul.addr %s225, 4
      %s227 = scalar_lea.vmem %s0, %s226
      %p228 = pneg %p52
      %p229 = pneg %p49
      %p230 = pneg %p73
      %p231 = pneg %p70
      %p232 = pneg %p94
      %p233 = pneg %p91
      %p234 = pneg %p115
      %p235 = pneg %p112
      %p236 = pneg %p143
      %p237 = pneg %p140
      %s238 = smul.u32 2, %s22
      %p239 = scmp.lt.s32.totalorder %s21, 1
      %s240 = scalar_select %p239, %s21, 1
      %p241 = scmp.lt.s32.totalorder %s238, 1
      %s242 = scalar_select %p241, %s238, 1
      %s243 = smul.addr %s240, 14
      %s244 = sadd.s32 %s242, %s243
      %s245 = smul.addr %s244, 8
      %s246 = scalar_lea.vmem %s4, %s245
      %p247 = pneg %p171
      %p248 = pneg %p168
      %s249 = smul.u32 2, %s22
      %p250 = scmp.lt.s32.totalorder %s21, 1
      %s251 = scalar_select %p250, %s21, 1
      %p252 = scmp.lt.s32.totalorder %s249, 1
      %s253 = scalar_select %p252, %s249, 1
      %s254 = smul.addr %s251, 14
      %s255 = sadd.s32 %s253, %s254
      %s256 = smul.addr %s255, 8
      %s257 = scalar_lea.vmem %s5, %s256
      %s258 = smul.u32 2, %s22
      %p259 = scmp.lt.s32.totalorder %s21, 1
      %s260 = scalar_select %p259, %s21, 1
      %p261 = scmp.lt.s32.totalorder %s258, 1
      %s262 = scalar_select %p261, %s258, 1
      %s263 = smul.addr %s260, 2
      %s264 = sadd.s32 %s262, %s263
      %s265 = smul.addr %s264, 4
      %s266 = scalar_lea.vmem %s0, %s265
      %s267 = smul.u32 2, %s22
      %s268 = smul.u32 2, %s22
      %p269 = scmp.lt.s32.totalorder %s21, 1
      %s270 = scalar_select %p269, %s21, 1
      %p271 = scmp.lt.s32.totalorder %s268, 1
      %s272 = scalar_select %p271, %s268, 1
      %s273 = smul.addr %s270, 14
      %s274 = sadd.s32 %s272, %s273
      %s275 = smul.addr %s274, 8
      %s276 = scalar_lea.vmem %s4, %s275
      %s277 = smul.u32 2, %s22
      %s278 = smul.u32 2, %s22
      %p279 = scmp.lt.s32.totalorder %s21, 1
      %s280 = scalar_select %p279, %s21, 1
      %p281 = scmp.lt.s32.totalorder %s278, 1
      %s282 = scalar_select %p281, %s278, 1
      %s283 = smul.addr %s280, 14
      %s284 = sadd.s32 %s282, %s283
      %s285 = smul.addr %s284, 8
      %s286 = scalar_lea.vmem %s5, %s285
      %s287 = smul.u32 2, %s22
      %v288 = vld [vmem:[%s266] sm:$0xff]
      %v289 = vld [vmem:[%s1] sm:$0xff]
      %v290 = vld [vmem:[%s1 + $0x8] sm:$0xff]
      %v291 = vld [vmem:[%s1 + $0x10] sm:$0xff]
      %v292 = vld [vmem:[%s1 + $0x18] sm:$0xff]
      %v293 = vld [vmem:[%s1 + $0x20] sm:$0xff]
      %v294 = vld [vmem:[%s1 + $0x28] sm:$0xff]
      %v295 = vld [vmem:[%s1 + $0x30] sm:$0x3f]
      %v296 = vld [vmem:[%s2] sm:$0xff]
      %v297 = vld [vmem:[%s2 + $0x8] sm:$0xff]
      %v298 = vld [vmem:[%s2 + $0x10] sm:$0xff]
      %v299 = vld [vmem:[%s2 + $0x18] sm:$0xff]
      %v300 = vld [vmem:[%s2 + $0x20] sm:$0xff]
      %v301 = vld [vmem:[%s2 + $0x28] sm:$0xff]
      %v302 = vld [vmem:[%s2 + $0x30] sm:$0x3f]
      %304 = vset.pattern.permute.xlu0 0
      %305 = vperm.xlu0 %304, %v296
      %v306 = vpop.permute.xlu0 %305
      %309 = vset.pattern.permute.xlu0 0
      %310 = vperm.xlu0 %309, %v297
      %v311 = vpop.permute.xlu0 %310
      %314 = vset.pattern.permute.xlu0 0
      %315 = vperm.xlu0 %314, %v298
      %v316 = vpop.permute.xlu0 %315
      %319 = vset.pattern.permute.xlu0 0
      %320 = vperm.xlu0 %319, %v299
      %v321 = vpop.permute.xlu0 %320
      %324 = vset.pattern.permute.xlu0 0
      %325 = vperm.xlu0 %324, %v300
      %v326 = vpop.permute.xlu0 %325
      %329 = vset.pattern.permute.xlu0 0
      %330 = vperm.xlu0 %329, %v301
      %v331 = vpop.permute.xlu0 %330
      %334 = vset.pattern.permute.xlu0 0
      %335 = vperm.xlu0 %334, %v302
      %v336 = vpop.permute.xlu0 %335
      %339 = vst [vmem:[#allocation1] ss:$2 sm:$0xff] %v288
      %v340 = vld.sshfl [vmem:[#allocation1] sm:$0xff pattern:$0x75316420]
      %v341 = vld.sshfl [vmem:[#allocation1 + $0x8] sm:$0xff pattern:$0x75316420]
      %vm342 = vcmask 31744
      %v344 = vsel %vm342, %v289, 0
      %v347 = vsel %vm342, %v290, 0
      %v350 = vsel %vm342, %v291, 0
      %v353 = vsel %vm342, %v292, 0
      %v356 = vsel %vm342, %v293, 0
      %v359 = vsel %vm342, %v294, 0
      %v362 = vsel %vm342, %v295, 0
      %vm364 = vcmask 1043456
      %v365 = vsel %vm364, %v340, 0
      %v367 = vsel %vm364, %v341, 0
      %369 = vmatpush.msra.mxu0 0.0
      %370 = vmatpush.msra.mxu0 0.0
      %371 = vmatpush.msra.mxu0 0.0
      %372 = vmatpush.msra.mxu0 0.0
      %373 = vmatpush.msra.mxu0 0.0
      %374 = vmatpush.msra.mxu0 0.0
      %375 = vmatpush.msra.mxu0 0.0
      %376 = vmatpush.msra.mxu0 0.0
      %377 = vmatpush.msra.mxu0 0.0
      %378 = vmatpush.msra.mxu0 0.0
      %379 = vmatpush.msra.mxu0 0.0
      %380 = vmatpush.msra.mxu0 0.0
      %381 = vmatpush.msra.mxu0 0.0
      %382 = vmatpush.msra.mxu0 0.0
      %383 = vmatpush.msra.mxu0 0.0
      %384 = vmatpush.msra.mxu0 %v365
      %385 = vmatmul.f32.gmra.mxu0 %v344
      %v386 = vpop.f32.mrf.mxu0
      %v387 = vadd.f32 %v306, %v386
      %388 = vmatmul.f32.gmra.mxu0 %v347
      %v389 = vpop.f32.mrf.mxu0
      %v390 = vadd.f32 %v311, %v389
      %391 = vmatmul.f32.gmra.mxu0 %v350
      %v392 = vpop.f32.mrf.mxu0
      %v393 = vadd.f32 %v316, %v392
      %394 = vmatmul.f32.gmra.mxu0 %v353
      %v395 = vpop.f32.mrf.mxu0
      %v396 = vadd.f32 %v321, %v395
      %397 = vmatmul.f32.gmra.mxu0 %v356
      %v398 = vpop.f32.mrf.mxu0
      %v399 = vadd.f32 %v326, %v398
      %400 = vmatmul.f32.gmra.mxu0 %v359
      %v401 = vpop.f32.mrf.mxu0
      %v402 = vadd.f32 %v331, %v401
      %403 = vmatmul.f32.gmra.mxu0 %v362
      %v404 = vpop.f32.mrf.mxu0
      %v405 = vadd.f32 %v336, %v404
      %406 = vdwg.mxu0
      %407 = vmatpush.msra.mxu0 0.0
      %408 = vmatpush.msra.mxu0 0.0
      %409 = vmatpush.msra.mxu0 0.0
      %410 = vmatpush.msra.mxu0 0.0
      %411 = vmatpush.msra.mxu0 0.0
      %412 = vmatpush.msra.mxu0 0.0
      %413 = vmatpush.msra.mxu0 0.0
      %414 = vmatpush.msra.mxu0 0.0
      %415 = vmatpush.msra.mxu0 0.0
      %416 = vmatpush.msra.mxu0 0.0
      %417 = vmatpush.msra.mxu0 0.0
      %418 = vmatpush.msra.mxu0 0.0
      %419 = vmatpush.msra.mxu0 0.0
      %420 = vmatpush.msra.mxu0 0.0
      %421 = vmatpush.msra.mxu0 0.0
      %422 = vmatpush.msra.mxu0 %v367
      %423 = vmatmul.f32.gmra.mxu0 %v344
      %v424 = vpop.f32.mrf.mxu0
      %v425 = vadd.f32 %v306, %v424
      %426 = vmatmul.f32.gmra.mxu0 %v347
      %v427 = vpop.f32.mrf.mxu0
      %v428 = vadd.f32 %v311, %v427
      %429 = vmatmul.f32.gmra.mxu0 %v350
      %v430 = vpop.f32.mrf.mxu0
      %v431 = vadd.f32 %v316, %v430
      %432 = vmatmul.f32.gmra.mxu0 %v353
      %v433 = vpop.f32.mrf.mxu0
      %v434 = vadd.f32 %v321, %v433
      %435 = vmatmul.f32.gmra.mxu0 %v356
      %v436 = vpop.f32.mrf.mxu0
      %v437 = vadd.f32 %v326, %v436
      %438 = vmatmul.f32.gmra.mxu0 %v359
      %v439 = vpop.f32.mrf.mxu0
      %v440 = vadd.f32 %v331, %v439
      %441 = vmatmul.f32.gmra.mxu0 %v362
      %v442 = vpop.f32.mrf.mxu0
      %v443 = vadd.f32 %v336, %v442
      %444 = vdwg.mxu0
      %445 = vst [vmem:[%s276] sm:$0xff] %v387
      %446 = vst [vmem:[%s276 + $0x8] sm:$0xff] %v425
      %447 = vst [vmem:[%s276 + $0x10] sm:$0xff] %v390
      %448 = vst [vmem:[%s276 + $0x18] sm:$0xff] %v428
      %449 = vst [vmem:[%s276 + $0x20] sm:$0xff] %v393
      %450 = vst [vmem:[%s276 + $0x28] sm:$0xff] %v431
      %451 = vst [vmem:[%s276 + $0x30] sm:$0xff] %v396
      %452 = vst [vmem:[%s276 + $0x38] sm:$0xff] %v434
      %453 = vst [vmem:[%s276 + $0x40] sm:$0xff] %v399
      %454 = vst [vmem:[%s276 + $0x48] sm:$0xff] %v437
      %455 = vst [vmem:[%s276 + $0x50] sm:$0xff] %v402
      %456 = vst [vmem:[%s276 + $0x58] sm:$0xff] %v440
      %457 = vst [vmem:[%s276 + $0x60] sm:$0x3f] %v405
      %458 = vst [vmem:[%s276 + $0x68] sm:$0x3f] %v443
      %v459 = vmul.f32 %v387, 0.5
      %v460 = vmul.f32 %v425, 0.5
      %v461 = vmul.f32 %v390, 0.5
      %v462 = vmul.f32 %v428, 0.5
      %v463 = vmul.f32 %v393, 0.5
      %v464 = vmul.f32 %v431, 0.5
      %v465 = vmul.f32 %v396, 0.5
      %v466 = vmul.f32 %v434, 0.5
      %v467 = vmul.f32 %v399, 0.5
      %v468 = vmul.f32 %v437, 0.5
      %v469 = vmul.f32 %v402, 0.5
      %v470 = vmul.f32 %v440, 0.5
      %v471 = vmul.f32 %v405, 0.5
      %v472 = vmul.f32 %v443, 0.5
      %v473 = vtanh.pop %v459
      %v474 = vtanh.pop %v460
      %v475 = vtanh.pop %v461
      %v476 = vtanh.pop %v462
      %v477 = vtanh.pop %v463
      %v478 = vtanh.pop %v464
      %v479 = vtanh.pop %v465
      %v480 = vtanh.pop %v466
      %v481 = vtanh.pop %v467
      %v482 = vtanh.pop %v468
      %v483 = vtanh.pop %v469
      %v484 = vtanh.pop %v470
      %v485 = vtanh.pop %v471
      %v486 = vtanh.pop %v472
      %v487 = vmul.f32 %v473, 0.5
      %v488 = vmul.f32 %v474, 0.5
      %v489 = vmul.f32 %v475, 0.5
      %v490 = vmul.f32 %v476, 0.5
      %v491 = vmul.f32 %v477, 0.5
      %v492 = vmul.f32 %v478, 0.5
      %v493 = vmul.f32 %v479, 0.5
      %v494 = vmul.f32 %v480, 0.5
      %v495 = vmul.f32 %v481, 0.5
      %v496 = vmul.f32 %v482, 0.5
      %v497 = vmul.f32 %v483, 0.5
      %v498 = vmul.f32 %v484, 0.5
      %v499 = vmul.f32 %v485, 0.5
      %v500 = vmul.f32 %v486, 0.5
      %v501 = vadd.f32 %v487, 0.5
      %v502 = vadd.f32 %v488, 0.5
      %v503 = vadd.f32 %v489, 0.5
      %v504 = vadd.f32 %v490, 0.5
      %v505 = vadd.f32 %v491, 0.5
      %v506 = vadd.f32 %v492, 0.5
      %v507 = vadd.f32 %v493, 0.5
      %v508 = vadd.f32 %v494, 0.5
      %v509 = vadd.f32 %v495, 0.5
      %v510 = vadd.f32 %v496, 0.5
      %v511 = vadd.f32 %v497, 0.5
      %v512 = vadd.f32 %v498, 0.5
      %v513 = vadd.f32 %v499, 0.5
      %v514 = vadd.f32 %v500, 0.5
      %v515 = vlaneseq
      %v516 = vand.u32 %v515, 127
      %v517 = vadd.s32 %v516, 128
      %v518 = vcvt.s32.f32 %v516
      %v519 = vcvt.s32.f32 %v517
      %s520 = smul.u32 %s22, 256
      %s521 = scvt.s32.f32 %s520
      %v522 = vstv %s521
      %v523 = vadd.f32 %v518, %v522
      %v524 = vadd.f32 %v519, %v522
      %v525 = vrcp.pop 16.0
      %v526 = vmul.f32 16.0, %v525
      %v527 = vsub.f32 1.0, %v526
      %v528 = vmul.f32 %v525, %v527
      %v529 = vadd.f32 %v525, %v528
      %vm530 = vweird.f32 %v525
      %v531 = vsel %vm530, %v525, %v529
      %v532 = vmul.f32 %v523, %v531
      %v533 = vmul.f32 %v524, %v531
      %v534 = vfloor.f32 %v532
      %v535 = vfloor.f32 %v533
      %v536 = vmul.f32 %v534, 16.0
      %v537 = vmul.f32 %v535, 16.0
      %v538 = vsub.f32 %v523, %v536
      %v539 = vsub.f32 %v524, %v537
      %v540 = vmul.f32 %v538, 8.0
      %v541 = vmul.f32 %v539, 8.0
      %v542 = vsub.f32 %v540, 4.0
      %v543 = vsub.f32 %v541, 4.0
      %v544 = vmul.f32 %v534, 8.0
      %v545 = vmul.f32 %v535, 8.0
      %v546 = vsub.f32 %v544, 4.0
      %v547 = vsub.f32 %v545, 4.0
      %v548 = vlaneseq
      %v549 = vshrl.u32 %v548, 7
      %v550 = vadd.s32 %v549, 8
      %v551 = vadd.s32 %v549, 16
      %v552 = vadd.s32 %v549, 24
      %v553 = vadd.s32 %v549, 32
      %v554 = vadd.s32 %v549, 40
      %v555 = vadd.s32 %v549, 48
      %vm556 = vcmp.lt.s32.totalorder %v549, 3
      %vm557 = vcmp.lt.s32.totalorder %v550, 3
      %vm558 = vcmp.lt.s32.totalorder %v551, 3
      %vm559 = vcmp.lt.s32.totalorder %v552, 3
      %vm560 = vcmp.lt.s32.totalorder %v553, 3
      %vm561 = vcmp.lt.s32.totalorder %v554, 3
      %vm562 = vcmp.lt.s32.totalorder %v555, 3
      %vm563 = vcmp.lt.s32.totalorder %v549, 6
      %vm564 = vcmp.lt.s32.totalorder %v550, 6
      %vm565 = vcmp.lt.s32.totalorder %v551, 6
      %vm566 = vcmp.lt.s32.totalorder %v552, 6
      %vm567 = vcmp.lt.s32.totalorder %v553, 6
      %vm568 = vcmp.lt.s32.totalorder %v554, 6
      %vm569 = vcmp.lt.s32.totalorder %v555, 6
      %vm570 = vcmp.ge.s32.totalorder %v549, 6
      %vm571 = vcmp.ge.s32.totalorder %v550, 6
      %vm572 = vcmp.ge.s32.totalorder %v551, 6
      %vm573 = vcmp.ge.s32.totalorder %v552, 6
      %vm574 = vcmp.ge.s32.totalorder %v553, 6
      %vm575 = vcmp.ge.s32.totalorder %v554, 6
      %vm576 = vcmp.ge.s32.totalorder %v555, 6
      %vm577 = vcmp.lt.s32.totalorder %v549, 12
      %vm578 = vcmp.lt.s32.totalorder %v550, 12
      %vm579 = vcmp.lt.s32.totalorder %v551, 12
      %vm580 = vcmp.lt.s32.totalorder %v552, 12
      %vm581 = vcmp.lt.s32.totalorder %v553, 12
      %vm582 = vcmp.lt.s32.totalorder %v554, 12
      %vm583 = vcmp.lt.s32.totalorder %v555, 12
      %vm584 = vmand %vm570, %vm577
      %vm585 = vmand %vm571, %vm578
      %vm586 = vmand %vm572, %vm579
      %vm587 = vmand %vm573, %vm580
      %vm588 = vmand %vm574, %vm581
      %vm589 = vmand %vm575, %vm582
      %vm590 = vmand %vm576, %vm583
      %v591 = vsel %vm556, 1, 0
      %v592 = vsel %vm557, 1, 0
      %v593 = vsel %vm558, 1, 0
      %v594 = vsel %vm559, 1, 0
      %v595 = vsel %vm560, 1, 0
      %v596 = vsel %vm561, 1, 0
      %v597 = vsel %vm562, 1, 0
      %vm598 = vcmp.eq.s32.totalorder %v591, 1
      %vm599 = vcmp.eq.s32.totalorder %v592, 1
      %vm600 = vcmp.eq.s32.totalorder %v593, 1
      %vm601 = vcmp.eq.s32.totalorder %v594, 1
      %vm602 = vcmp.eq.s32.totalorder %v595, 1
      %vm603 = vcmp.eq.s32.totalorder %v596, 1
      %vm604 = vcmp.eq.s32.totalorder %v597, 1
      %v605 = vsel %vm598, %v542, %v546
      %v606 = vsel %vm598, %v543, %v547
      %v607 = vsel %vm599, %v542, %v546
      %v608 = vsel %vm599, %v543, %v547
      %v609 = vsel %vm600, %v542, %v546
      %v610 = vsel %vm600, %v543, %v547
      %v611 = vsel %vm601, %v542, %v546
      %v612 = vsel %vm601, %v543, %v547
      %v613 = vsel %vm602, %v542, %v546
      %v614 = vsel %vm602, %v543, %v547
      %v615 = vsel %vm603, %v542, %v546
      %v616 = vsel %vm603, %v543, %v547
      %v617 = vsel %vm604, %v542, %v546
      %v618 = vsel %vm604, %v543, %v547
      %v619 = vmul.f32 %v501, 16.0
      %v620 = vmul.f32 %v502, 16.0
      %v621 = vmul.f32 %v503, 16.0
      %v622 = vmul.f32 %v504, 16.0
      %v623 = vmul.f32 %v505, 16.0
      %v624 = vmul.f32 %v506, 16.0
      %v625 = vmul.f32 %v507, 16.0
      %v626 = vmul.f32 %v508, 16.0
      %v627 = vmul.f32 %v509, 16.0
      %v628 = vmul.f32 %v510, 16.0
      %v629 = vmul.f32 %v511, 16.0
      %v630 = vmul.f32 %v512, 16.0
      %v631 = vmul.f32 %v513, 16.0
      %v632 = vmul.f32 %v514, 16.0
      %v633 = vadd.f32 %v619, %v605
      %v634 = vadd.f32 %v620, %v606
      %v635 = vadd.f32 %v621, %v607
      %v636 = vadd.f32 %v622, %v608
      %v637 = vadd.f32 %v623, %v609
      %v638 = vadd.f32 %v624, %v610
      %v639 = vadd.f32 %v625, %v611
      %v640 = vadd.f32 %v626, %v612
      %v641 = vadd.f32 %v627, %v613
      %v642 = vadd.f32 %v628, %v614
      %v643 = vadd.f32 %v629, %v615
      %v644 = vadd.f32 %v630, %v616
      %v645 = vadd.f32 %v631, %v617
      %v646 = vadd.f32 %v632, %v618
      %v647 = vmul.f32 %v501, %v501
      %v648 = vmul.f32 %v502, %v502
      %v649 = vmul.f32 %v503, %v503
      %v650 = vmul.f32 %v504, %v504
      %v651 = vmul.f32 %v505, %v505
      %v652 = vmul.f32 %v506, %v506
      %v653 = vmul.f32 %v507, %v507
      %v654 = vmul.f32 %v508, %v508
      %v655 = vmul.f32 %v509, %v509
      %v656 = vmul.f32 %v510, %v510
      %v657 = vmul.f32 %v511, %v511
      %v658 = vmul.f32 %v512, %v512
      %v659 = vmul.f32 %v513, %v513
      %v660 = vmul.f32 %v514, %v514
      %v661 = vld [vmem:[%s3] sm:$0xff]
      %v662 = vld [vmem:[%s3 + $0x8] sm:$0xff]
      %v663 = vld [vmem:[%s3 + $0x10] sm:$0xff]
      %v664 = vld [vmem:[%s3 + $0x18] sm:$0xff]
      %v665 = vld [vmem:[%s3 + $0x20] sm:$0xff]
      %v666 = vld [vmem:[%s3 + $0x28] sm:$0xff]
      %v667 = vld [vmem:[%s3 + $0x30] sm:$0x3f]
      %669 = vset.pattern.permute.xlu0 0
      %670 = vperm.xlu0 %669, %v661
      %v671 = vpop.permute.xlu0 %670
      %674 = vset.pattern.permute.xlu0 0
      %675 = vperm.xlu0 %674, %v662
      %v676 = vpop.permute.xlu0 %675
      %679 = vset.pattern.permute.xlu0 0
      %680 = vperm.xlu0 %679, %v663
      %v681 = vpop.permute.xlu0 %680
      %684 = vset.pattern.permute.xlu0 0
      %685 = vperm.xlu0 %684, %v664
      %v686 = vpop.permute.xlu0 %685
      %689 = vset.pattern.permute.xlu0 0
      %690 = vperm.xlu0 %689, %v665
      %v691 = vpop.permute.xlu0 %690
      %694 = vset.pattern.permute.xlu0 0
      %695 = vperm.xlu0 %694, %v666
      %v696 = vpop.permute.xlu0 %695
      %699 = vset.pattern.permute.xlu0 0
      %700 = vperm.xlu0 %699, %v667
      %v701 = vpop.permute.xlu0 %700
      %v703 = vmul.f32 %v647, %v671
      %v704 = vmul.f32 %v648, %v671
      %v705 = vmul.f32 %v649, %v676
      %v706 = vmul.f32 %v650, %v676
      %v707 = vmul.f32 %v651, %v681
      %v708 = vmul.f32 %v652, %v681
      %v709 = vmul.f32 %v653, %v686
      %v710 = vmul.f32 %v654, %v686
      %v711 = vmul.f32 %v655, %v691
      %v712 = vmul.f32 %v656, %v691
      %v713 = vmul.f32 %v657, %v696
      %v714 = vmul.f32 %v658, %v696
      %v715 = vmul.f32 %v659, %v701
      %v716 = vmul.f32 %v660, %v701
      %v717 = vsel %vm584, 1, 0
      %v718 = vsel %vm585, 1, 0
      %v719 = vsel %vm586, 1, 0
      %v720 = vsel %vm587, 1, 0
      %v721 = vsel %vm588, 1, 0
      %v722 = vsel %vm589, 1, 0
      %v723 = vsel %vm590, 1, 0
      %vm724 = vcmp.eq.s32.totalorder %v717, 1
      %vm725 = vcmp.eq.s32.totalorder %v718, 1
      %vm726 = vcmp.eq.s32.totalorder %v719, 1
      %vm727 = vcmp.eq.s32.totalorder %v720, 1
      %vm728 = vcmp.eq.s32.totalorder %v721, 1
      %vm729 = vcmp.eq.s32.totalorder %v722, 1
      %vm730 = vcmp.eq.s32.totalorder %v723, 1
      %v731 = vsel %vm724, %v703, %v501
      %v732 = vsel %vm724, %v704, %v502
      %v733 = vsel %vm725, %v705, %v503
      %v734 = vsel %vm725, %v706, %v504
      %v735 = vsel %vm726, %v707, %v505
      %v736 = vsel %vm726, %v708, %v506
      %v737 = vsel %vm727, %v709, %v507
      %v738 = vsel %vm727, %v710, %v508
      %v739 = vsel %vm728, %v711, %v509
      %v740 = vsel %vm728, %v712, %v510
      %v741 = vsel %vm729, %v713, %v511
      %v742 = vsel %vm729, %v714, %v512
      %v743 = vsel %vm730, %v715, %v513
      %v744 = vsel %vm730, %v716, %v514
      %v745 = vsel %vm563, 1, 0
      %v746 = vsel %vm564, 1, 0
      %v747 = vsel %vm565, 1, 0
      %v748 = vsel %vm566, 1, 0
      %v749 = vsel %vm567, 1, 0
      %v750 = vsel %vm568, 1, 0
      %v751 = vsel %vm569, 1, 0
      %vm752 = vcmp.eq.s32.totalorder %v745, 1
      %vm753 = vcmp.eq.s32.totalorder %v746, 1
      %vm754 = vcmp.eq.s32.totalorder %v747, 1
      %vm755 = vcmp.eq.s32.totalorder %v748, 1
      %vm756 = vcmp.eq.s32.totalorder %v749, 1
      %vm757 = vcmp.eq.s32.totalorder %v750, 1
      %vm758 = vcmp.eq.s32.totalorder %v751, 1
      %v759 = vsel %vm752, %v633, %v731
      %v760 = vsel %vm752, %v634, %v732
      %v761 = vsel %vm753, %v635, %v733
      %v762 = vsel %vm753, %v636, %v734
      %v763 = vsel %vm754, %v637, %v735
      %v764 = vsel %vm754, %v638, %v736
      %v765 = vsel %vm755, %v639, %v737
      %v766 = vsel %vm755, %v640, %v738
      %v767 = vsel %vm756, %v641, %v739
      %v768 = vsel %vm756, %v642, %v740
      %v769 = vsel %vm757, %v643, %v741
      %v770 = vsel %vm757, %v644, %v742
      %v771 = vsel %vm758, %v645, %v743
      %v772 = vsel %vm758, %v646, %v744
      %773 = vst [vmem:[%s286] sm:$0xff] %v759
      %774 = vst [vmem:[%s286 + $0x8] sm:$0xff] %v760
      %775 = vst [vmem:[%s286 + $0x10] sm:$0xff] %v761
      %776 = vst [vmem:[%s286 + $0x18] sm:$0xff] %v762
      %777 = vst [vmem:[%s286 + $0x20] sm:$0xff] %v763
      %778 = vst [vmem:[%s286 + $0x28] sm:$0xff] %v764
      %779 = vst [vmem:[%s286 + $0x30] sm:$0xff] %v765
      %780 = vst [vmem:[%s286 + $0x38] sm:$0xff] %v766
      %781 = vst [vmem:[%s286 + $0x40] sm:$0xff] %v767
      %782 = vst [vmem:[%s286 + $0x48] sm:$0xff] %v768
      %783 = vst [vmem:[%s286 + $0x50] sm:$0xff] %v769
      %784 = vst [vmem:[%s286 + $0x58] sm:$0xff] %v770
      %785 = vst [vmem:[%s286 + $0x60] sm:$0x3f] %v771
      %786 = vst [vmem:[%s286 + $0x68] sm:$0x3f] %v772
      %s787 = smul.u32 2, %s22
      %p788 = scmp.lt.s32.totalorder %s21, 1
      %s789 = scalar_select %p788, %s21, 1
      %p790 = scmp.lt.s32.totalorder %s787, 1
      %s791 = scalar_select %p790, %s787, 1
      %s792 = smul.addr %s789, 14
      %s793 = sadd.s32 %s791, %s792
      %s794 = smul.addr %s793, 8
      %s795 = scalar_lea.vmem %s4, %s794
      %s796 = smul.u32 2, %s22
      %p797 = scmp.lt.s32.totalorder %s21, 1
      %s798 = scalar_select %p797, %s21, 1
      %p799 = scmp.lt.s32.totalorder %s796, 1
      %s800 = scalar_select %p799, %s796, 1
      %s801 = smul.addr %s798, 14
      %s802 = sadd.s32 %s800, %s801
      %s803 = smul.addr %s802, 8
      %s804 = scalar_lea.vmem %s5, %s803
      // Predicated region
      $region37: #{detect_forward.3} parent=35 // pred_check
        %p805 = pneg %p140
      $region38: #{detect_forward.3} parent=35 // pred_check_branch
        %807 = sbr.rel (%p805) target = $region40
      $region39: #{detect_forward.3} parent=35 // pred_region
        %s808 = smul.u32 2, %s22
      $region40: #{detect_forward.3} parent=35 // pred_fallthru
        _
      // Predicated region
      $region41: #{detect_forward.3} parent=35 // pred_check
        %p809 = pneg %p168
      $region42: #{detect_forward.3} parent=35 // pred_check_branch
        %811 = sbr.rel (%p809) target = $region44
      $region43: #{detect_forward.3} parent=35 // pred_region
        %s812 = smul.u32 2, %s22
      $region44: #{detect_forward.3} parent=35 // pred_fallthru
        _
    $region36: #{detect_forward.3} parent=5 // pred_fallthru
      _
    %p813 = scmp.le.s32.totalorder 2, %s12
    // Predicated region
    $region45: #{detect_forward.3} parent=5 // pred_check
      %p814 = pneg %p813
    $region46: #{detect_forward.3} parent=5 // pred_check_branch
      %816 = sbr.rel (%p814) target = $region48
    $region47: #{detect_forward.3} parent=5 // pred_region
      %s817 = ssub.s32 %s12, 2
      // Predicated region
      $region49: #{detect_forward.3} parent=47 // pred_check
        %p818 = pneg %p146
      $region50: #{detect_forward.3} parent=47 // pred_check_branch
        %820 = sbr.rel (%p818) target = $region52
      $region51: #{detect_forward.3} parent=47 // pred_region
        %s821 = smul.u32 2, %s24
        %p822 = scmp.lt.s32.totalorder %s23, 1
        %s823 = scalar_select %p822, %s23, 1
        %p824 = scmp.lt.s32.totalorder %s821, 1
        %s825 = scalar_select %p824, %s821, 1
        %s826 = smul.addr %s823, 14
        %s827 = sadd.s32 %s825, %s826
        %s828 = smul.addr %s827, 8
        %s829 = scalar_lea.vmem %s4, %s828
      $region52: #{detect_forward.3} parent=47 // pred_fallthru
        _
      // Predicated region
      $region53: #{detect_forward.3} parent=47 // pred_check
        %p830 = pneg %p174
      $region54: #{detect_forward.3} parent=47 // pred_check_branch
        %832 = sbr.rel (%p830) target = $region56
      $region55: #{detect_forward.3} parent=47 // pred_region
        %s833 = smul.u32 2, %s24
        %p834 = scmp.lt.s32.totalorder %s23, 1
        %s835 = scalar_select %p834, %s23, 1
        %p836 = scmp.lt.s32.totalorder %s833, 1
        %s837 = scalar_select %p836, %s833, 1
        %s838 = smul.addr %s835, 14
        %s839 = sadd.s32 %s837, %s838
        %s840 = smul.addr %s839, 8
        %s841 = scalar_lea.vmem %s5, %s840
      $region56: #{detect_forward.3} parent=47 // pred_fallthru
        _
    $region48: #{detect_forward.3} parent=5 // pred_fallthru
      _
  $region6: #{detect_forward.3} parent=0 // loop_footer
    %s16 = sadd.s32 1, %s12
  $region7: #{detect_forward.3} parent=0 // loop_footer_branch
    %11 = sbr.rel target = $region3
  $region8: #{detect_forward.3} parent=0 // loop_exit
    _

// kernel: detect_forward.4
$region0: #{detect_forward.4}
  #allocation0 [shape = 'u32[]', space=smem, size = 0x4, offset = 0x4, fixed_abs, tag = 'smem constant byte address 0x4 - core index']
  #allocation1 [shape = 'u32[72,128]{1,0:T(1,128)}', space=vmem, size = 0x9000, scoped, tag = 'internal scratch']
  %s0 = inlined_call_operand.vmem [shape: f32[2,8,64], index: 0, kind: input, shape index: {}]
  %s1 = inlined_call_operand.vmem [shape: f32[54,8], index: 1, kind: input, shape index: {}]
  %s2 = inlined_call_operand.vmem [shape: f32[54,1], index: 2, kind: input, shape index: {}]
  %s3 = inlined_call_operand.vmem [shape: f32[54,1], index: 3, kind: input, shape index: {}]
  %s4 = inlined_call_operand.vmem [shape: f32[2,54,64], index: 4, kind: output, shape index: {0}]
  %s5 = inlined_call_operand.vmem [shape: f32[2,54,64], index: 5, kind: output, shape index: {1}]
  %6 = xla_tuple %s4, %s5
  %s7 = sld [smem:[#allocation0]]
  $region57: #{detect_forward.4} parent=0
    _
  %s9 = ssub.s32 1, %s7
  %s10 = scalar_select 0, %s9, %s7
  loop: start=0, step=1, limit=4
  $region2: #{detect_forward.4} parent=0 // loop_pre_header
    _
  $region3: #{detect_forward.4} parent=0 // loop_header
    %s12 = sphi 0, %s16
    %p13 = scmp.ge.s32.totalorder %s12, 4
    %s19 = sphi 0, %s31
    %s20 = sphi 0, %s27
    %s21 = sphi 0, %s19
    %s22 = sphi 0, %s20
    %s23 = sphi 0, %s21
    %s24 = sphi 0, %s22
    %s36 = sphi 0, %s38
    %s39 = sphi 0, %s36
    %s40 = sphi 0, %s39
    %s56 = sphi 0, %s40
    %s60 = sphi 0, %s60
    %s62 = sphi 0, %s60
    %s63 = sphi 0, %s62
    %s77 = sphi 0, %s63
    %s81 = sphi 0, %s81
    %s83 = sphi 0, %s81
    %s84 = sphi 0, %s83
    %s98 = sphi 0, %s84
    %s102 = sphi 0, %s102
    %s104 = sphi 0, %s102
    %s105 = sphi 0, %s104
    %s119 = sphi 0, %s105
    %s127 = sphi 0, %s129
    %s130 = sphi 0, %s127
    %s131 = sphi 0, %s130
    %s147 = sphi 0, %s131
    %s155 = sphi 0, %s157
    %s158 = sphi 0, %s155
    %s159 = sphi 0, %s158
    %s175 = sphi 0, %s159
  $region4: #{detect_forward.4} parent=0 // loop_header_branch
    %15 = sbr.rel (%p13) target = $region8
  $region5: #{detect_forward.4} parent=0 // loop_body
    %s17 = ssub.s32 %s12, 1
    %s18 = ssub.s32 %s12, 2
    %s25 = sadd.s32 1, %s20
    %p26 = scmp.ge.s32.totalorder %s25, 1
    %s27 = scalar_select %p26, 0, %s25
    %s28 = sadd.s32 1, %s19
    %s29 = scalar_select %p26, %s28, %s19
    %p30 = scmp.ge.s32.totalorder %s29, 2
    %s31 = scalar_select %p30, 0, %s29
    %s32 = ssub.s32 %s19, %s31
    %s33 = ssub.s32 %s20, %s27
    %s34 = sor.u32 %s32, %s33
    %p35 = scmp.eq.s32.totalorder %s34, 0
    %s37 = sadd.s32 %s36, 1
    %s38 = scalar_select %p35, %s36, %s37
    %p41 = pneg %p35
    %p42 = scmp.eq.s32.totalorder %s12, 1
    %p43 = por %p41, %p42
    %p44 = scmp.ne.s32.totalorder %s36, %s39
    %p45 = scmp.eq.s32.totalorder %s12, 0
    %p46 = por %p44, %p45
    %p47 = scmp.ne.s32.totalorder %s36, %s39
    %p48 = scmp.eq.s32.totalorder %s17, 1
    %p49 = por %p47, %p48
    %p50 = scmp.ne.s32.totalorder %s39, %s40
    %p51 = scmp.eq.s32.totalorder %s17, 0
    %p52 = por %p50, %p51
    %p53 = scmp.ne.s32.totalorder %s39, %s40
    %p54 = scmp.eq.s32.totalorder %s18, 1
    %p55 = por %p53, %p54
    %p57 = scmp.ne.s32.totalorder %s40, %s56
    %p58 = scmp.eq.s32.totalorder %s18, 0
    %p59 = por %p57, %p58
    %s61 = sadd.s32 %s60, 1
    %p64 = scmp.eq.s32.totalorder %s12, 1
    %p65 = scmp.ne.s32.totalorder %s60, %s62
    %p66 = scmp.eq.s32.totalorder %s12, 0
    %p67 = por %p65, %p66
    %p68 = scmp.ne.s32.totalorder %s60, %s62
    %p69 = scmp.eq.s32.totalorder %s17, 1
    %p70 = por %p68, %p69
    %p71 = scmp.ne.s32.totalorder %s62, %s63
    %p72 = scmp.eq.s32.totalorder %s17, 0
    %p73 = por %p71, %p72
    %p74 = scmp.ne.s32.totalorder %s62, %s63
    %p75 = scmp.eq.s32.totalorder %s18, 1
    %p76 = por %p74, %p75
    %p78 = scmp.ne.s32.totalorder %s63, %s77
    %p79 = scmp.eq.s32.totalorder %s18, 0
    %p80 = por %p78, %p79
    %s82 = sadd.s32 %s81, 1
    %p85 = scmp.eq.s32.totalorder %s12, 1
    %p86 = scmp.ne.s32.totalorder %s81, %s83
    %p87 = scmp.eq.s32.totalorder %s12, 0
    %p88 = por %p86, %p87
    %p89 = scmp.ne.s32.totalorder %s81, %s83
    %p90 = scmp.eq.s32.totalorder %s17, 1
    %p91 = por %p89, %p90
    %p92 = scmp.ne.s32.totalorder %s83, %s84
    %p93 = scmp.eq.s32.totalorder %s17, 0
    %p94 = por %p92, %p93
    %p95 = scmp.ne.s32.totalorder %s83, %s84
    %p96 = scmp.eq.s32.totalorder %s18, 1
    %p97 = por %p95, %p96
    %p99 = scmp.ne.s32.totalorder %s84, %s98
    %p100 = scmp.eq.s32.totalorder %s18, 0
    %p101 = por %p99, %p100
    %s103 = sadd.s32 %s102, 1
    %p106 = scmp.eq.s32.totalorder %s12, 1
    %p107 = scmp.ne.s32.totalorder %s102, %s104
    %p108 = scmp.eq.s32.totalorder %s12, 0
    %p109 = por %p107, %p108
    %p110 = scmp.ne.s32.totalorder %s102, %s104
    %p111 = scmp.eq.s32.totalorder %s17, 1
    %p112 = por %p110, %p111
    %p113 = scmp.ne.s32.totalorder %s104, %s105
    %p114 = scmp.eq.s32.totalorder %s17, 0
    %p115 = por %p113, %p114
    %p116 = scmp.ne.s32.totalorder %s104, %s105
    %p117 = scmp.eq.s32.totalorder %s18, 1
    %p118 = por %p116, %p117
    %p120 = scmp.ne.s32.totalorder %s105, %s119
    %p121 = scmp.eq.s32.totalorder %s18, 0
    %p122 = por %p120, %p121
    %s123 = ssub.s32 %s19, %s31
    %s124 = ssub.s32 %s20, %s27
    %s125 = sor.u32 %s123, %s124
    %p126 = scmp.eq.s32.totalorder %s125, 0
    %s128 = sadd.s32 %s127, 1
    %s129 = scalar_select %p126, %s127, %s128
    %p132 = pneg %p126
    %p133 = scmp.eq.s32.totalorder %s12, 1
    %p134 = por %p132, %p133
    %p135 = scmp.ne.s32.totalorder %s127, %s130
    %p136 = scmp.eq.s32.totalorder %s12, 0
    %p137 = por %p135, %p136
    %p138 = scmp.ne.s32.totalorder %s127, %s130
    %p139 = scmp.eq.s32.totalorder %s17, 1
    %p140 = por %p138, %p139
    %p141 = scmp.ne.s32.totalorder %s130, %s131
    %p142 = scmp.eq.s32.totalorder %s17, 0
    %p143 = por %p141, %p142
    %p144 = scmp.ne.s32.totalorder %s130, %s131
    %p145 = scmp.eq.s32.totalorder %s18, 1
    %p146 = por %p144, %p145
    %p148 = scmp.ne.s32.totalorder %s131, %s147
    %p149 = scmp.eq.s32.totalorder %s18, 0
    %p150 = por %p148, %p149
    %s151 = ssub.s32 %s19, %s31
    %s152 = ssub.s32 %s20, %s27
    %s153 = sor.u32 %s151, %s152
    %p154 = scmp.eq.s32.totalorder %s153, 0
    %s156 = sadd.s32 %s155, 1
    %s157 = scalar_select %p154, %s155, %s156
    %p160 = pneg %p154
    %p161 = scmp.eq.s32.totalorder %s12, 1
    %p162 = por %p160, %p161
    %p163 = scmp.ne.s32.totalorder %s155, %s158
    %p164 = scmp.eq.s32.totalorder %s12, 0
    %p165 = por %p163, %p164
    %p166 = scmp.ne.s32.totalorder %s155, %s158
    %p167 = scmp.eq.s32.totalorder %s17, 1
    %p168 = por %p166, %p167
    %p169 = scmp.ne.s32.totalorder %s158, %s159
    %p170 = scmp.eq.s32.totalorder %s17, 0
    %p171 = por %p169, %p170
    %p172 = scmp.ne.s32.totalorder %s158, %s159
    %p173 = scmp.eq.s32.totalorder %s18, 1
    %p174 = por %p172, %p173
    %p176 = scmp.ne.s32.totalorder %s159, %s175
    %p177 = scmp.eq.s32.totalorder %s18, 0
    %p178 = por %p176, %p177
    %p179 = scmp.le.s32.totalorder 1, %s12
    %p180 = scmp.lt.s32.totalorder %s12, 3
    %p181 = pnand %p179, %p180
    %p182 = pneg %p181
    // Predicated region
    $region9: #{detect_forward.4} parent=5 // pred_check
      _
    $region10: #{detect_forward.4} parent=5 // pred_check_branch
      %184 = sbr.rel (%p181) target = $region12
    $region11: #{detect_forward.4} parent=5 // pred_region
      %s185 = ssub.s32 %s12, 1
      // Predicated region
      $region13: #{detect_forward.4} parent=11 // pred_check
        %p186 = pneg %p73
      $region14: #{detect_forward.4} parent=11 // pred_check_branch
        %188 = sbr.rel (%p186) target = $region16
      $region15: #{detect_forward.4} parent=11 // pred_region
        _
      $region16: #{detect_forward.4} parent=11 // pred_fallthru
        _
      // Predicated region
      $region17: #{detect_forward.4} parent=11 // pred_check
        %p189 = pneg %p94
      $region18: #{detect_forward.4} parent=11 // pred_check_branch
        %191 = sbr.rel (%p189) target = $region20
      $region19: #{detect_forward.4} parent=11 // pred_region
        _
      $region20: #{detect_forward.4} parent=11 // pred_fallthru
        _
      // Predicated region
      $region21: #{detect_forward.4} parent=11 // pred_check
        %p192 = pneg %p115
      $region22: #{detect_forward.4} parent=11 // pred_check_branch
        %194 = sbr.rel (%p192) target = $region24
      $region23: #{detect_forward.4} parent=11 // pred_region
        _
      $region24: #{detect_forward.4} parent=11 // pred_fallthru
        _
    $region12: #{detect_forward.4} parent=5 // pred_fallthru
      _
    %p195 = scmp.lt.s32.totalorder %s12, 2
    // Predicated region
    $region25: #{detect_forward.4} parent=5 // pred_check
      %p196 = pneg %p195
    $region26: #{detect_forward.4} parent=5 // pred_check_branch
      %198 = sbr.rel (%p196) target = $region28
    $region27: #{detect_forward.4} parent=5 // pred_region
      // Predicated region
      $region29: #{detect_forward.4} parent=27 // pred_check
        %p199 = pneg %p46
      $region30: #{detect_forward.4} parent=27 // pred_check_branch
        %201 = sbr.rel (%p199) target = $region32
      $region31: #{detect_forward.4} parent=27 // pred_region
        %p202 = scmp.lt.s32.totalorder %s19, 1
        %s203 = scalar_select %p202, %s19, 1
        %p204 = scmp.lt.s32.totalorder %s20, 0
        %s205 = scalar_select %p204, %s20, 0
        %s206 = sadd.s32 %s205, %s203
        %s207 = smul.addr %s206, 8
        %s208 = scalar_lea.vmem %s0, %s207
      $region32: #{detect_forward.4} parent=27 // pred_fallthru
        _
    $region28: #{detect_forward.4} parent=5 // pred_fallthru
      _
    %p209 = scmp.le.s32.totalorder 1, %s12
    %p210 = scmp.lt.s32.totalorder %s12, 3
    %p211 = pnand %p209, %p210
    %p212 = pneg %p211
    // Predicated region
    $region33: #{detect_forward.4} parent=5 // pred_check
      _
    $region34: #{detect_forward.4} parent=5 // pred_check_branch
      %214 = sbr.rel (%p211) target = $region36
    $region35: #{detect_forward.4} parent=5 // pred_region
      %s215 = ssub.s32 %s12, 1
      %p216 = scmp.lt.s32.totalorder %s21, 1
      %s217 = scalar_select %p216, %s21, 1
      %p218 = scmp.lt.s32.totalorder %s22, 0
      %s219 = scalar_select %p218, %s22, 0
      %s220 = sadd.s32 %s219, %s217
      %s221 = smul.addr %s220, 8
      %s222 = scalar_lea.vmem %s0, %s221
      %p223 = pneg %p52
      %p224 = pneg %p49
      %p225 = pneg %p73
      %p226 = pneg %p70
      %p227 = pneg %p94
      %p228 = pneg %p91
      %p229 = pneg %p115
      %p230 = pneg %p112
      %p231 = pneg %p143
      %p232 = pneg %p140
      %p233 = scmp.lt.s32.totalorder %s21, 1
      %s234 = scalar_select %p233, %s21, 1
      %p235 = scmp.lt.s32.totalorder %s22, 0
      %s236 = scalar_select %p235, %s22, 0
      %s237 = smul.addr %s234, 7
      %s238 = sadd.s32 %s236, %s237
      %s239 = smul.addr %s238, 8
      %s240 = scalar_lea.vmem %s4, %s239
      %p241 = pneg %p171
      %p242 = pneg %p168
      %p243 = scmp.lt.s32.totalorder %s21, 1
      %s244 = scalar_select %p243, %s21, 1
      %p245 = scmp.lt.s32.totalorder %s22, 0
      %s246 = scalar_select %p245, %s22, 0
      %s247 = smul.addr %s244, 7
      %s248 = sadd.s32 %s246, %s247
      %s249 = smul.addr %s248, 8
      %s250 = scalar_lea.vmem %s5, %s249
      %p251 = scmp.lt.s32.totalorder %s21, 1
      %s252 = scalar_select %p251, %s21, 1
      %p253 = scmp.lt.s32.totalorder %s22, 0
      %s254 = scalar_select %p253, %s22, 0
      %s255 = sadd.s32 %s254, %s252
      %s256 = smul.addr %s255, 8
      %s257 = scalar_lea.vmem %s0, %s256
      %p258 = scmp.lt.s32.totalorder %s21, 1
      %s259 = scalar_select %p258, %s21, 1
      %p260 = scmp.lt.s32.totalorder %s22, 0
      %s261 = scalar_select %p260, %s22, 0
      %s262 = smul.addr %s259, 7
      %s263 = sadd.s32 %s261, %s262
      %s264 = smul.addr %s263, 8
      %s265 = scalar_lea.vmem %s4, %s264
      %p266 = scmp.lt.s32.totalorder %s21, 1
      %s267 = scalar_select %p266, %s21, 1
      %p268 = scmp.lt.s32.totalorder %s22, 0
      %s269 = scalar_select %p268, %s22, 0
      %s270 = smul.addr %s267, 7
      %s271 = sadd.s32 %s269, %s270
      %s272 = smul.addr %s271, 8
      %s273 = scalar_lea.vmem %s5, %s272
      %v274 = vld [vmem:[%s257] sm:$0xff]
      %v275 = vld [vmem:[%s1] sm:$0xff]
      %v276 = vld [vmem:[%s1 + $0x8] sm:$0xff]
      %v277 = vld [vmem:[%s1 + $0x10] sm:$0xff]
      %v278 = vld [vmem:[%s1 + $0x18] sm:$0xff]
      %v279 = vld [vmem:[%s1 + $0x20] sm:$0xff]
      %v280 = vld [vmem:[%s1 + $0x28] sm:$0xff]
      %v281 = vld [vmem:[%s1 + $0x30] sm:$0x3f]
      %v282 = vld [vmem:[%s2] sm:$0xff]
      %v283 = vld [vmem:[%s2 + $0x8] sm:$0xff]
      %v284 = vld [vmem:[%s2 + $0x10] sm:$0xff]
      %v285 = vld [vmem:[%s2 + $0x18] sm:$0xff]
      %v286 = vld [vmem:[%s2 + $0x20] sm:$0xff]
      %v287 = vld [vmem:[%s2 + $0x28] sm:$0xff]
      %v288 = vld [vmem:[%s2 + $0x30] sm:$0x3f]
      %290 = vset.pattern.permute.xlu0 0
      %291 = vperm.xlu0 %290, %v282
      %v292 = vpop.permute.xlu0 %291
      %295 = vset.pattern.permute.xlu0 0
      %296 = vperm.xlu0 %295, %v283
      %v297 = vpop.permute.xlu0 %296
      %300 = vset.pattern.permute.xlu0 0
      %301 = vperm.xlu0 %300, %v284
      %v302 = vpop.permute.xlu0 %301
      %305 = vset.pattern.permute.xlu0 0
      %306 = vperm.xlu0 %305, %v285
      %v307 = vpop.permute.xlu0 %306
      %310 = vset.pattern.permute.xlu0 0
      %311 = vperm.xlu0 %310, %v286
      %v312 = vpop.permute.xlu0 %311
      %315 = vset.pattern.permute.xlu0 0
      %316 = vperm.xlu0 %315, %v287
      %v317 = vpop.permute.xlu0 %316
      %320 = vset.pattern.permute.xlu0 0
      %321 = vperm.xlu0 %320, %v288
      %v322 = vpop.permute.xlu0 %321
      %vm324 = vcmask 64512
      %v326 = vsel %vm324, %v275, 0
      %v329 = vsel %vm324, %v276, 0
      %v332 = vsel %vm324, %v277, 0
      %v335 = vsel %vm324, %v278, 0
      %v338 = vsel %vm324, %v279, 0
      %v341 = vsel %vm324, %v280, 0
      %v344 = vsel %vm324, %v281, 0
      %346 = vmatpush.msra.mxu0 0.0
      %347 = vmatpush.msra.mxu0 0.0
      %348 = vmatpush.msra.mxu0 0.0
      %349 = vmatpush.msra.mxu0 0.0
      %350 = vmatpush.msra.mxu0 0.0
      %351 = vmatpush.msra.mxu0 0.0
      %352 = vmatpush.msra.mxu0 0.0
      %353 = vmatpush.msra.mxu0 0.0
      %354 = vmatpush.msra.mxu0 0.0
      %355 = vmatpush.msra.mxu0 0.0
      %356 = vmatpush.msra.mxu0 0.0
      %357 = vmatpush.msra.mxu0 0.0
      %358 = vmatpush.msra.mxu0 0.0
      %359 = vmatpush.msra.mxu0 0.0
      %360 = vmatpush.msra.mxu0 0.0
      %361 = vmatpush.msra.mxu0 %v274
      %362 = vmatmul.f32.gmra.mxu0 %v326
      %v363 = vpop.f32.mrf.mxu0
      %v364 = vadd.f32 %v292, %v363
      %365 = vmatmul.f32.gmra.mxu0 %v329
      %v366 = vpop.f32.mrf.mxu0
      %v367 = vadd.f32 %v297, %v366
      %368 = vmatmul.f32.gmra.mxu0 %v332
      %v369 = vpop.f32.mrf.mxu0
      %v370 = vadd.f32 %v302, %v369
      %371 = vmatmul.f32.gmra.mxu0 %v335
      %v372 = vpop.f32.mrf.mxu0
      %v373 = vadd.f32 %v307, %v372
      %374 = vmatmul.f32.gmra.mxu0 %v338
      %v375 = vpop.f32.mrf.mxu0
      %v376 = vadd.f32 %v312, %v375
      %377 = vmatmul.f32.gmra.mxu0 %v341
      %v378 = vpop.f32.mrf.mxu0
      %v379 = vadd.f32 %v317, %v378
      %380 = vmatmul.f32.gmra.mxu0 %v344
      %v381 = vpop.f32.mrf.mxu0
      %v382 = vadd.f32 %v322, %v381
      %383 = vdwg.mxu0
      %vm384 = vcmask 523264
      %385 = vst.msk [vmem:[%s265] sm:$0xff] %vm384, %v364
      %386 = vst.msk [vmem:[%s265 + $0x8] sm:$0xff] %vm384, %v367
      %387 = vst.msk [vmem:[%s265 + $0x10] sm:$0xff] %vm384, %v370
      %388 = vst.msk [vmem:[%s265 + $0x18] sm:$0xff] %vm384, %v373
      %389 = vst.msk [vmem:[%s265 + $0x20] sm:$0xff] %vm384, %v376
      %390 = vst.msk [vmem:[%s265 + $0x28] sm:$0xff] %vm384, %v379
      %vm391 = vcmask 521216
      %392 = vst.msk [vmem:[%s265 + $0x30] sm:$0x3f] %vm391, %v382
      %v393 = vmul.f32 %v364, 0.5
      %v394 = vmul.f32 %v367, 0.5
      %v395 = vmul.f32 %v370, 0.5
      %v396 = vmul.f32 %v373, 0.5
      %v397 = vmul.f32 %v376, 0.5
      %v398 = vmul.f32 %v379, 0.5
      %v399 = vmul.f32 %v382, 0.5
      %v400 = vtanh.pop %v393
      %v401 = vtanh.pop %v394
      %v402 = vtanh.pop %v395
      %v403 = vtanh.pop %v396
      %v404 = vtanh.pop %v397
      %v405 = vtanh.pop %v398
      %v406 = vtanh.pop %v399
      %v407 = vmul.f32 %v400, 0.5
      %v408 = vmul.f32 %v401, 0.5
      %v409 = vmul.f32 %v402, 0.5
      %v410 = vmul.f32 %v403, 0.5
      %v411 = vmul.f32 %v404, 0.5
      %v412 = vmul.f32 %v405, 0.5
      %v413 = vmul.f32 %v406, 0.5
      %v414 = vadd.f32 %v407, 0.5
      %v415 = vadd.f32 %v408, 0.5
      %v416 = vadd.f32 %v409, 0.5
      %v417 = vadd.f32 %v410, 0.5
      %v418 = vadd.f32 %v411, 0.5
      %v419 = vadd.f32 %v412, 0.5
      %v420 = vadd.f32 %v413, 0.5
      %v421 = vlaneseq
      %v422 = vand.u32 %v421, 127
      %v423 = vcvt.s32.f32 %v422
      %s424 = smul.u32 %s22, 64
      %s425 = scvt.s32.f32 %s424
      %v426 = vstv %s425
      %v427 = vadd.f32 %v423, %v426
      %v428 = vrcp.pop 8.0
      %v429 = vmul.f32 8.0, %v428
      %v430 = vsub.f32 1.0, %v429
      %v431 = vmul.f32 %v428, %v430
      %v432 = vadd.f32 %v428, %v431
      %vm433 = vweird.f32 %v428
      %v434 = vsel %vm433, %v428, %v432
      %v435 = vmul.f32 %v427, %v434
      %v436 = vfloor.f32 %v435
      %v437 = vmul.f32 %v436, 8.0
      %v438 = vsub.f32 %v427, %v437
      %v439 = vmul.f32 %v438, 16.0
      %v440 = vsub.f32 %v439, 8.0
      %v441 = vmul.f32 %v436, 16.0
      %v442 = vsub.f32 %v441, 8.0
      %v443 = vlaneseq
      %v444 = vshrl.u32 %v443, 7
      %v445 = vadd.s32 %v444, 8
      %v446 = vadd.s32 %v444, 16
      %v447 = vadd.s32 %v444, 24
      %v448 = vadd.s32 %v444, 32
      %v449 = vadd.s32 %v444, 40
      %v450 = vadd.s32 %v444, 48
      %vm451 = vcmp.lt.s32.totalorder %v444, 3
      %vm452 = vcmp.lt.s32.totalorder %v445, 3
      %vm453 = vcmp.lt.s32.totalorder %v446, 3
      %vm454 = vcmp.lt.s32.totalorder %v447, 3
      %vm455 = vcmp.lt.s32.totalorder %v448, 3
      %vm456 = vcmp.lt.s32.totalorder %v449, 3
      %vm457 = vcmp.lt.s32.totalorder %v450, 3
      %vm458 = vcmp.lt.s32.totalorder %v444, 6
      %vm459 = vcmp.lt.s32.totalorder %v445, 6
      %vm460 = vcmp.lt.s32.totalorder %v446, 6
      %vm461 = vcmp.lt.s32.totalorder %v447, 6
      %vm462 = vcmp.lt.s32.totalorder %v448, 6
      %vm463 = vcmp.lt.s32.totalorder %v449, 6
      %vm464 = vcmp.lt.s32.totalorder %v450, 6
      %vm465 = vcmp.ge.s32.totalorder %v444, 6
      %vm466 = vcmp.ge.s32.totalorder %v445, 6
      %vm467 = vcmp.ge.s32.totalorder %v446, 6
      %vm468 = vcmp.ge.s32.totalorder %v447, 6
      %vm469 = vcmp.ge.s32.totalorder %v448, 6
      %vm470 = vcmp.ge.s32.totalorder %v449, 6
      %vm471 = vcmp.ge.s32.totalorder %v450, 6
      %vm472 = vcmp.lt.s32.totalorder %v444, 12
      %vm473 = vcmp.lt.s32.totalorder %v445, 12
      %vm474 = vcmp.lt.s32.totalorder %v446, 12
      %vm475 = vcmp.lt.s32.totalorder %v447, 12
      %vm476 = vcmp.lt.s32.totalorder %v448, 12
      %vm477 = vcmp.lt.s32.totalorder %v449, 12
      %vm478 = vcmp.lt.s32.totalorder %v450, 12
      %vm479 = vmand %vm465, %vm472
      %vm480 = vmand %vm466, %vm473
      %vm481 = vmand %vm467, %vm474
      %vm482 = vmand %vm468, %vm475
      %vm483 = vmand %vm469, %vm476
      %vm484 = vmand %vm470, %vm477
      %vm485 = vmand %vm471, %vm478
      %v486 = vsel %vm451, 1, 0
      %v487 = vsel %vm452, 1, 0
      %v488 = vsel %vm453, 1, 0
      %v489 = vsel %vm454, 1, 0
      %v490 = vsel %vm455, 1, 0
      %v491 = vsel %vm456, 1, 0
      %v492 = vsel %vm457, 1, 0
      %vm493 = vcmp.eq.s32.totalorder %v486, 1
      %vm494 = vcmp.eq.s32.totalorder %v487, 1
      %vm495 = vcmp.eq.s32.totalorder %v488, 1
      %vm496 = vcmp.eq.s32.totalorder %v489, 1
      %vm497 = vcmp.eq.s32.totalorder %v490, 1
      %vm498 = vcmp.eq.s32.totalorder %v491, 1
      %vm499 = vcmp.eq.s32.totalorder %v492, 1
      %v500 = vsel %vm493, %v440, %v442
      %v501 = vsel %vm494, %v440, %v442
      %v502 = vsel %vm495, %v440, %v442
      %v503 = vsel %vm496, %v440, %v442
      %v504 = vsel %vm497, %v440, %v442
      %v505 = vsel %vm498, %v440, %v442
      %v506 = vsel %vm499, %v440, %v442
      %v507 = vmul.f32 %v414, 32.0
      %v508 = vmul.f32 %v415, 32.0
      %v509 = vmul.f32 %v416, 32.0
      %v510 = vmul.f32 %v417, 32.0
      %v511 = vmul.f32 %v418, 32.0
      %v512 = vmul.f32 %v419, 32.0
      %v513 = vmul.f32 %v420, 32.0
      %v514 = vadd.f32 %v507, %v500
      %v515 = vadd.f32 %v508, %v501
      %v516 = vadd.f32 %v509, %v502
      %v517 = vadd.f32 %v510, %v503
      %v518 = vadd.f32 %v511, %v504
      %v519 = vadd.f32 %v512, %v505
      %v520 = vadd.f32 %v513, %v506
      %v521 = vmul.f32 %v414, %v414
      %v522 = vmul.f32 %v415, %v415
      %v523 = vmul.f32 %v416, %v416
      %v524 = vmul.f32 %v417, %v417
      %v525 = vmul.f32 %v418, %v418
      %v526 = vmul.f32 %v419, %v419
      %v527 = vmul.f32 %v420, %v420
      %v528 = vld [vmem:[%s3] sm:$0xff]
      %v529 = vld [vmem:[%s3 + $0x8] sm:$0xff]
      %v530 = vld [vmem:[%s3 + $0x10] sm:$0xff]
      %v531 = vld [vmem:[%s3 + $0x18] sm:$0xff]
      %v532 = vld [vmem:[%s3 + $0x20] sm:$0xff]
      %v533 = vld [vmem:[%s3 + $0x28] sm:$0xff]
      %v534 = vld [vmem:[%s3 + $0x30] sm:$0x3f]
      %536 = vset.pattern.permute.xlu0 0
      %537 = vperm.xlu0 %536, %v528
      %v538 = vpop.permute.xlu0 %537
      %541 = vset.pattern.permute.xlu0 0
      %542 = vperm.xlu0 %541, %v529
      %v543 = vpop.permute.xlu0 %542
      %546 = vset.pattern.permute.xlu0 0
      %547 = vperm.xlu0 %546, %v530
      %v548 = vpop.permute.xlu0 %547
      %551 = vset.pattern.permute.xlu0 0
      %552 = vperm.xlu0 %551, %v531
      %v553 = vpop.permute.xlu0 %552
      %556 = vset.pattern.permute.xlu0 0
      %557 = vperm.xlu0 %556, %v532
      %v558 = vpop.permute.xlu0 %557
      %561 = vset.pattern.permute.xlu0 0
      %562 = vperm.xlu0 %561, %v533
      %v563 = vpop.permute.xlu0 %562
      %566 = vset.pattern.permute.xlu0 0
      %567 = vperm.xlu0 %566, %v534
      %v568 = vpop.permute.xlu0 %567
      %v570 = vmul.f32 %v521, %v538
      %v571 = vmul.f32 %v522, %v543
      %v572 = vmul.f32 %v523, %v548
      %v573 = vmul.f32 %v524, %v553
      %v574 = vmul.f32 %v525, %v558
      %v575 = vmul.f32 %v526, %v563
      %v576 = vmul.f32 %v527, %v568
      %v577 = vsel %vm479, 1, 0
      %v578 = vsel %vm480, 1, 0
      %v579 = vsel %vm481, 1, 0
      %v580 = vsel %vm482, 1, 0
      %v581 = vsel %vm483, 1, 0
      %v582 = vsel %vm484, 1, 0
      %v583 = vsel %vm485, 1, 0
      %vm584 = vcmp.eq.s32.totalorder %v577, 1
      %vm585 = vcmp.eq.s32.totalorder %v578, 1
      %vm586 = vcmp.eq.s32.totalorder %v579, 1
      %vm587 = vcmp.eq.s32.totalorder %v580, 1
      %vm588 = vcmp.eq.s32.totalorder %v581, 1
      %vm589 = vcmp.eq.s32.totalorder %v582, 1
      %vm590 = vcmp.eq.s32.totalorder %v583, 1
      %v591 = vsel %vm584, %v570, %v414
      %v592 = vsel %vm585, %v571, %v415
      %v593 = vsel %vm586, %v572, %v416
      %v594 = vsel %vm587, %v573, %v417
      %v595 = vsel %vm588, %v574, %v418
      %v596 = vsel %vm589, %v575, %v419
      %v597 = vsel %vm590, %v576, %v420
      %v598 = vsel %vm458, 1, 0
      %v599 = vsel %vm459, 1, 0
      %v600 = vsel %vm460, 1, 0
      %v601 = vsel %vm461, 1, 0
      %v602 = vsel %vm462, 1, 0
      %v603 = vsel %vm463, 1, 0
      %v604 = vsel %vm464, 1, 0
      %vm605 = vcmp.eq.s32.totalorder %v598, 1
      %vm606 = vcmp.eq.s32.totalorder %v599, 1
      %vm607 = vcmp.eq.s32.totalorder %v600, 1
      %vm608 = vcmp.eq.s32.totalorder %v601, 1
      %vm609 = vcmp.eq.s32.totalorder %v602, 1
      %vm610 = vcmp.eq.s32.totalorder %v603, 1
      %vm611 = vcmp.eq.s32.totalorder %v604, 1
      %v612 = vsel %vm605, %v514, %v591
      %v613 = vsel %vm606, %v515, %v592
      %v614 = vsel %vm607, %v516, %v593
      %v615 = vsel %vm608, %v517, %v594
      %v616 = vsel %vm609, %v518, %v595
      %v617 = vsel %vm610, %v519, %v596
      %v618 = vsel %vm611, %v520, %v597
      %619 = vst.msk [vmem:[%s273] sm:$0xff] %vm384, %v612
      %620 = vst.msk [vmem:[%s273 + $0x8] sm:$0xff] %vm384, %v613
      %621 = vst.msk [vmem:[%s273 + $0x10] sm:$0xff] %vm384, %v614
      %622 = vst.msk [vmem:[%s273 + $0x18] sm:$0xff] %vm384, %v615
      %623 = vst.msk [vmem:[%s273 + $0x20] sm:$0xff] %vm384, %v616
      %624 = vst.msk [vmem:[%s273 + $0x28] sm:$0xff] %vm384, %v617
      %625 = vst.msk [vmem:[%s273 + $0x30] sm:$0x3f] %vm391, %v618
      %p626 = scmp.lt.s32.totalorder %s21, 1
      %s627 = scalar_select %p626, %s21, 1
      %p628 = scmp.lt.s32.totalorder %s22, 0
      %s629 = scalar_select %p628, %s22, 0
      %s630 = smul.addr %s627, 7
      %s631 = sadd.s32 %s629, %s630
      %s632 = smul.addr %s631, 8
      %s633 = scalar_lea.vmem %s4, %s632
      %p634 = scmp.lt.s32.totalorder %s21, 1
      %s635 = scalar_select %p634, %s21, 1
      %p636 = scmp.lt.s32.totalorder %s22, 0
      %s637 = scalar_select %p636, %s22, 0
      %s638 = smul.addr %s635, 7
      %s639 = sadd.s32 %s637, %s638
      %s640 = smul.addr %s639, 8
      %s641 = scalar_lea.vmem %s5, %s640
      // Predicated region
      $region37: #{detect_forward.4} parent=35 // pred_check
        %p642 = pneg %p140
      $region38: #{detect_forward.4} parent=35 // pred_check_branch
        %644 = sbr.rel (%p642) target = $region40
      $region39: #{detect_forward.4} parent=35 // pred_region
        _
      $region40: #{detect_forward.4} parent=35 // pred_fallthru
        _
      // Predicated region
      $region41: #{detect_forward.4} parent=35 // pred_check
        %p645 = pneg %p168
      $region42: #{detect_forward.4} parent=35 // pred_check_branch
        %647 = sbr.rel (%p645) target = $region44
      $region43: #{detect_forward.4} parent=35 // pred_region
        _
      $region44: #{detect_forward.4} parent=35 // pred_fallthru
        _
    $region36: #{detect_forward.4} parent=5 // pred_fallthru
      _
    %p648 = scmp.le.s32.totalorder 2, %s12
    // Predicated region
    $region45: #{detect_forward.4} parent=5 // pred_check
      %p649 = pneg %p648
    $region46: #{detect_forward.4} parent=5 // pred_check_branch
      %651 = sbr.rel (%p649) target = $region48
    $region47: #{detect_forward.4} parent=5 // pred_region
      %s652 = ssub.s32 %s12, 2
      // Predicated region
      $region49: #{detect_forward.4} parent=47 // pred_check
        %p653 = pneg %p146
      $region50: #{detect_forward.4} parent=47 // pred_check_branch
        %655 = sbr.rel (%p653) target = $region52
      $region51: #{detect_forward.4} parent=47 // pred_region
        %p656 = scmp.lt.s32.totalorder %s23, 1
        %s657 = scalar_select %p656, %s23, 1
        %p658 = scmp.lt.s32.totalorder %s24, 0
        %s659 = scalar_select %p658, %s24, 0
        %s660 = smul.addr %s657, 7
        %s661 = sadd.s32 %s659, %s660
        %s662 = smul.addr %s661, 8
        %s663 = scalar_lea.vmem %s4, %s662
      $region52: #{detect_forward.4} parent=47 // pred_fallthru
        _
      // Predicated region
      $region53: #{detect_forward.4} parent=47 // pred_check
        %p664 = pneg %p174
      $region54: #{detect_forward.4} parent=47 // pred_check_branch
        %666 = sbr.rel (%p664) target = $region56
      $region55: #{detect_forward.4} parent=47 // pred_region
        %p667 = scmp.lt.s32.totalorder %s23, 1
        %s668 = scalar_select %p667, %s23, 1
        %p669 = scmp.lt.s32.totalorder %s24, 0
        %s670 = scalar_select %p669, %s24, 0
        %s671 = smul.addr %s668, 7
        %s672 = sadd.s32 %s670, %s671
        %s673 = smul.addr %s672, 8
        %s674 = scalar_lea.vmem %s5, %s673
      $region56: #{detect_forward.4} parent=47 // pred_fallthru
        _
    $region48: #{detect_forward.4} parent=5 // pred_fallthru
      _
  $region6: #{detect_forward.4} parent=0 // loop_footer
    %s16 = sadd.s32 1, %s12
  $region7: #{detect_forward.4} parent=0 // loop_footer_branch
    %11 = sbr.rel target = $region3
  $region8: #{detect_forward.4} parent=0 // loop_exit
    _

// kernel: detect_forward.5
$region0: #{detect_forward.5}
  #allocation0 [shape = 'u32[]', space=smem, size = 0x4, offset = 0x4, fixed_abs, tag = 'smem constant byte address 0x4 - core index']
  #allocation1 [shape = 'u32[72,128]{1,0:T(1,128)}', space=vmem, size = 0x9000, scoped, tag = 'internal scratch']
  %s0 = inlined_call_operand.vmem [shape: f32[2,16,16], index: 0, kind: input, shape index: {}]
  %s1 = inlined_call_operand.vmem [shape: f32[54,16], index: 1, kind: input, shape index: {}]
  %s2 = inlined_call_operand.vmem [shape: f32[54,1], index: 2, kind: input, shape index: {}]
  %s3 = inlined_call_operand.vmem [shape: f32[54,1], index: 3, kind: input, shape index: {}]
  %s4 = inlined_call_operand.vmem [shape: f32[2,54,16], index: 4, kind: output, shape index: {0}]
  %s5 = inlined_call_operand.vmem [shape: f32[2,54,16], index: 5, kind: output, shape index: {1}]
  %6 = xla_tuple %s4, %s5
  %s7 = sld [smem:[#allocation0]]
  $region57: #{detect_forward.5} parent=0
    _
  %s9 = ssub.s32 1, %s7
  %s10 = scalar_select 0, %s9, %s7
  loop: start=0, step=1, limit=4
  $region2: #{detect_forward.5} parent=0 // loop_pre_header
    _
  $region3: #{detect_forward.5} parent=0 // loop_header
    %s12 = sphi 0, %s16
    %p13 = scmp.ge.s32.totalorder %s12, 4
    %s19 = sphi 0, %s31
    %s20 = sphi 0, %s27
    %s21 = sphi 0, %s19
    %s22 = sphi 0, %s20
    %s23 = sphi 0, %s21
    %s24 = sphi 0, %s22
    %s36 = sphi 0, %s38
    %s39 = sphi 0, %s36
    %s40 = sphi 0, %s39
    %s56 = sphi 0, %s40
    %s60 = sphi 0, %s60
    %s62 = sphi 0, %s60
    %s63 = sphi 0, %s62
    %s77 = sphi 0, %s63
    %s81 = sphi 0, %s81
    %s83 = sphi 0, %s81
    %s84 = sphi 0, %s83
    %s98 = sphi 0, %s84
    %s102 = sphi 0, %s102
    %s104 = sphi 0, %s102
    %s105 = sphi 0, %s104
    %s119 = sphi 0, %s105
    %s127 = sphi 0, %s129
    %s130 = sphi 0, %s127
    %s131 = sphi 0, %s130
    %s147 = sphi 0, %s131
    %s155 = sphi 0, %s157
    %s158 = sphi 0, %s155
    %s159 = sphi 0, %s158
    %s175 = sphi 0, %s159
  $region4: #{detect_forward.5} parent=0 // loop_header_branch
    %15 = sbr.rel (%p13) target = $region8
  $region5: #{detect_forward.5} parent=0 // loop_body
    %s17 = ssub.s32 %s12, 1
    %s18 = ssub.s32 %s12, 2
    %s25 = sadd.s32 1, %s20
    %p26 = scmp.ge.s32.totalorder %s25, 1
    %s27 = scalar_select %p26, 0, %s25
    %s28 = sadd.s32 1, %s19
    %s29 = scalar_select %p26, %s28, %s19
    %p30 = scmp.ge.s32.totalorder %s29, 2
    %s31 = scalar_select %p30, 0, %s29
    %s32 = ssub.s32 %s19, %s31
    %s33 = ssub.s32 %s20, %s27
    %s34 = sor.u32 %s32, %s33
    %p35 = scmp.eq.s32.totalorder %s34, 0
    %s37 = sadd.s32 %s36, 1
    %s38 = scalar_select %p35, %s36, %s37
    %p41 = pneg %p35
    %p42 = scmp.eq.s32.totalorder %s12, 1
    %p43 = por %p41, %p42
    %p44 = scmp.ne.s32.totalorder %s36, %s39
    %p45 = scmp.eq.s32.totalorder %s12, 0
    %p46 = por %p44, %p45
    %p47 = scmp.ne.s32.totalorder %s36, %s39
    %p48 = scmp.eq.s32.totalorder %s17, 1
    %p49 = por %p47, %p48
    %p50 = scmp.ne.s32.totalorder %s39, %s40
    %p51 = scmp.eq.s32.totalorder %s17, 0
    %p52 = por %p50, %p51
    %p53 = scmp.ne.s32.totalorder %s39, %s40
    %p54 = scmp.eq.s32.totalorder %s18, 1
    %p55 = por %p53, %p54
    %p57 = scmp.ne.s32.totalorder %s40, %s56
    %p58 = scmp.eq.s32.totalorder %s18, 0
    %p59 = por %p57, %p58
    %s61 = sadd.s32 %s60, 1
    %p64 = scmp.eq.s32.totalorder %s12, 1
    %p65 = scmp.ne.s32.totalorder %s60, %s62
    %p66 = scmp.eq.s32.totalorder %s12, 0
    %p67 = por %p65, %p66
    %p68 = scmp.ne.s32.totalorder %s60, %s62
    %p69 = scmp.eq.s32.totalorder %s17, 1
    %p70 = por %p68, %p69
    %p71 = scmp.ne.s32.totalorder %s62, %s63
    %p72 = scmp.eq.s32.totalorder %s17, 0
    %p73 = por %p71, %p72
    %p74 = scmp.ne.s32.totalorder %s62, %s63
    %p75 = scmp.eq.s32.totalorder %s18, 1
    %p76 = por %p74, %p75
    %p78 = scmp.ne.s32.totalorder %s63, %s77
    %p79 = scmp.eq.s32.totalorder %s18, 0
    %p80 = por %p78, %p79
    %s82 = sadd.s32 %s81, 1
    %p85 = scmp.eq.s32.totalorder %s12, 1
    %p86 = scmp.ne.s32.totalorder %s81, %s83
    %p87 = scmp.eq.s32.totalorder %s12, 0
    %p88 = por %p86, %p87
    %p89 = scmp.ne.s32.totalorder %s81, %s83
    %p90 = scmp.eq.s32.totalorder %s17, 1
    %p91 = por %p89, %p90
    %p92 = scmp.ne.s32.totalorder %s83, %s84
    %p93 = scmp.eq.s32.totalorder %s17, 0
    %p94 = por %p92, %p93
    %p95 = scmp.ne.s32.totalorder %s83, %s84
    %p96 = scmp.eq.s32.totalorder %s18, 1
    %p97 = por %p95, %p96
    %p99 = scmp.ne.s32.totalorder %s84, %s98
    %p100 = scmp.eq.s32.totalorder %s18, 0
    %p101 = por %p99, %p100
    %s103 = sadd.s32 %s102, 1
    %p106 = scmp.eq.s32.totalorder %s12, 1
    %p107 = scmp.ne.s32.totalorder %s102, %s104
    %p108 = scmp.eq.s32.totalorder %s12, 0
    %p109 = por %p107, %p108
    %p110 = scmp.ne.s32.totalorder %s102, %s104
    %p111 = scmp.eq.s32.totalorder %s17, 1
    %p112 = por %p110, %p111
    %p113 = scmp.ne.s32.totalorder %s104, %s105
    %p114 = scmp.eq.s32.totalorder %s17, 0
    %p115 = por %p113, %p114
    %p116 = scmp.ne.s32.totalorder %s104, %s105
    %p117 = scmp.eq.s32.totalorder %s18, 1
    %p118 = por %p116, %p117
    %p120 = scmp.ne.s32.totalorder %s105, %s119
    %p121 = scmp.eq.s32.totalorder %s18, 0
    %p122 = por %p120, %p121
    %s123 = ssub.s32 %s19, %s31
    %s124 = ssub.s32 %s20, %s27
    %s125 = sor.u32 %s123, %s124
    %p126 = scmp.eq.s32.totalorder %s125, 0
    %s128 = sadd.s32 %s127, 1
    %s129 = scalar_select %p126, %s127, %s128
    %p132 = pneg %p126
    %p133 = scmp.eq.s32.totalorder %s12, 1
    %p134 = por %p132, %p133
    %p135 = scmp.ne.s32.totalorder %s127, %s130
    %p136 = scmp.eq.s32.totalorder %s12, 0
    %p137 = por %p135, %p136
    %p138 = scmp.ne.s32.totalorder %s127, %s130
    %p139 = scmp.eq.s32.totalorder %s17, 1
    %p140 = por %p138, %p139
    %p141 = scmp.ne.s32.totalorder %s130, %s131
    %p142 = scmp.eq.s32.totalorder %s17, 0
    %p143 = por %p141, %p142
    %p144 = scmp.ne.s32.totalorder %s130, %s131
    %p145 = scmp.eq.s32.totalorder %s18, 1
    %p146 = por %p144, %p145
    %p148 = scmp.ne.s32.totalorder %s131, %s147
    %p149 = scmp.eq.s32.totalorder %s18, 0
    %p150 = por %p148, %p149
    %s151 = ssub.s32 %s19, %s31
    %s152 = ssub.s32 %s20, %s27
    %s153 = sor.u32 %s151, %s152
    %p154 = scmp.eq.s32.totalorder %s153, 0
    %s156 = sadd.s32 %s155, 1
    %s157 = scalar_select %p154, %s155, %s156
    %p160 = pneg %p154
    %p161 = scmp.eq.s32.totalorder %s12, 1
    %p162 = por %p160, %p161
    %p163 = scmp.ne.s32.totalorder %s155, %s158
    %p164 = scmp.eq.s32.totalorder %s12, 0
    %p165 = por %p163, %p164
    %p166 = scmp.ne.s32.totalorder %s155, %s158
    %p167 = scmp.eq.s32.totalorder %s17, 1
    %p168 = por %p166, %p167
    %p169 = scmp.ne.s32.totalorder %s158, %s159
    %p170 = scmp.eq.s32.totalorder %s17, 0
    %p171 = por %p169, %p170
    %p172 = scmp.ne.s32.totalorder %s158, %s159
    %p173 = scmp.eq.s32.totalorder %s18, 1
    %p174 = por %p172, %p173
    %p176 = scmp.ne.s32.totalorder %s159, %s175
    %p177 = scmp.eq.s32.totalorder %s18, 0
    %p178 = por %p176, %p177
    %p179 = scmp.le.s32.totalorder 1, %s12
    %p180 = scmp.lt.s32.totalorder %s12, 3
    %p181 = pnand %p179, %p180
    %p182 = pneg %p181
    // Predicated region
    $region9: #{detect_forward.5} parent=5 // pred_check
      _
    $region10: #{detect_forward.5} parent=5 // pred_check_branch
      %184 = sbr.rel (%p181) target = $region12
    $region11: #{detect_forward.5} parent=5 // pred_region
      %s185 = ssub.s32 %s12, 1
      // Predicated region
      $region13: #{detect_forward.5} parent=11 // pred_check
        %p186 = pneg %p73
      $region14: #{detect_forward.5} parent=11 // pred_check_branch
        %188 = sbr.rel (%p186) target = $region16
      $region15: #{detect_forward.5} parent=11 // pred_region
        _
      $region16: #{detect_forward.5} parent=11 // pred_fallthru
        _
      // Predicated region
      $region17: #{detect_forward.5} parent=11 // pred_check
        %p189 = pneg %p94
      $region18: #{detect_forward.5} parent=11 // pred_check_branch
        %191 = sbr.rel (%p189) target = $region20
      $region19: #{detect_forward.5} parent=11 // pred_region
        _
      $region20: #{detect_forward.5} parent=11 // pred_fallthru
        _
      // Predicated region
      $region21: #{detect_forward.5} parent=11 // pred_check
        %p192 = pneg %p115
      $region22: #{detect_forward.5} parent=11 // pred_check_branch
        %194 = sbr.rel (%p192) target = $region24
      $region23: #{detect_forward.5} parent=11 // pred_region
        _
      $region24: #{detect_forward.5} parent=11 // pred_fallthru
        _
    $region12: #{detect_forward.5} parent=5 // pred_fallthru
      _
    %p195 = scmp.lt.s32.totalorder %s12, 2
    // Predicated region
    $region25: #{detect_forward.5} parent=5 // pred_check
      %p196 = pneg %p195
    $region26: #{detect_forward.5} parent=5 // pred_check_branch
      %198 = sbr.rel (%p196) target = $region28
    $region27: #{detect_forward.5} parent=5 // pred_region
      // Predicated region
      $region29: #{detect_forward.5} parent=27 // pred_check
        %p199 = pneg %p46
      $region30: #{detect_forward.5} parent=27 // pred_check_branch
        %201 = sbr.rel (%p199) target = $region32
      $region31: #{detect_forward.5} parent=27 // pred_region
        %p202 = scmp.lt.s32.totalorder %s19, 1
        %s203 = scalar_select %p202, %s19, 1
        %p204 = scmp.lt.s32.totalorder %s20, 0
        %s205 = scalar_select %p204, %s20, 0
        %s206 = smul.addr %s203, 2
        %s207 = sadd.s32 %s205, %s206
        %s208 = smul.addr %s207, 8
        %s209 = scalar_lea.vmem %s0, %s208
      $region32: #{detect_forward.5} parent=27 // pred_fallthru
        _
    $region28: #{detect_forward.5} parent=5 // pred_fallthru
      _
    %p210 = scmp.le.s32.totalorder 1, %s12
    %p211 = scmp.lt.s32.totalorder %s12, 3
    %p212 = pnand %p210, %p211
    %p213 = pneg %p212
    // Predicated region
    $region33: #{detect_forward.5} parent=5 // pred_check
      _
    $region34: #{detect_forward.5} parent=5 // pred_check_branch
      %215 = sbr.rel (%p212) target = $region36
    $region35: #{detect_forward.5} parent=5 // pred_region
      %s216 = ssub.s32 %s12, 1
      %p217 = scmp.lt.s32.totalorder %s21, 1
      %s218 = scalar_select %p217, %s21, 1
      %p219 = scmp.lt.s32.totalorder %s22, 0
      %s220 = scalar_select %p219, %s22, 0
      %s221 = smul.addr %s218, 2
      %s222 = sadd.s32 %s220, %s221
      %s223 = smul.addr %s222, 8
      %s224 = scalar_lea.vmem %s0, %s223
      %p225 = pneg %p52
      %p226 = pneg %p49
      %p227 = pneg %p73
      %p228 = pneg %p70
      %p229 = pneg %p94
      %p230 = pneg %p91
      %p231 = pneg %p115
      %p232 = pneg %p112
      %p233 = pneg %p143
      %p234 = pneg %p140
      %p235 = scmp.lt.s32.totalorder %s21, 1
      %s236 = scalar_select %p235, %s21, 1
      %p237 = scmp.lt.s32.totalorder %s22, 0
      %s238 = scalar_select %p237, %s22, 0
      %s239 = smul.addr %s236, 7
      %s240 = sadd.s32 %s238, %s239
      %s241 = smul.addr %s240, 8
      %s242 = scalar_lea.vmem %s4, %s241
      %p243 = pneg %p171
      %p244 = pneg %p168
      %p245 = scmp.lt.s32.totalorder %s21, 1
      %s246 = scalar_select %p245, %s21, 1
      %p247 = scmp.lt.s32.totalorder %s22, 0
      %s248 = scalar_select %p247, %s22, 0
      %s249 = smul.addr %s246, 7
      %s250 = sadd.s32 %s248, %s249
      %s251 = smul.addr %s250, 8
      %s252 = scalar_lea.vmem %s5, %s251
      %p253 = scmp.lt.s32.totalorder %s21, 1
      %s254 = scalar_select %p253, %s21, 1
      %p255 = scmp.lt.s32.totalorder %s22, 0
      %s256 = scalar_select %p255, %s22, 0
      %s257 = smul.addr %s254, 2
      %s258 = sadd.s32 %s256, %s257
      %s259 = smul.addr %s258, 8
      %s260 = scalar_lea.vmem %s0, %s259
      %p261 = scmp.lt.s32.totalorder %s21, 1
      %s262 = scalar_select %p261, %s21, 1
      %p263 = scmp.lt.s32.totalorder %s22, 0
      %s264 = scalar_select %p263, %s22, 0
      %s265 = smul.addr %s262, 7
      %s266 = sadd.s32 %s264, %s265
      %s267 = smul.addr %s266, 8
      %s268 = scalar_lea.vmem %s4, %s267
      %p269 = scmp.lt.s32.totalorder %s21, 1
      %s270 = scalar_select %p269, %s21, 1
      %p271 = scmp.lt.s32.totalorder %s22, 0
      %s272 = scalar_select %p271, %s22, 0
      %s273 = smul.addr %s270, 7
      %s274 = sadd.s32 %s272, %s273
      %s275 = smul.addr %s274, 8
      %s276 = scalar_lea.vmem %s5, %s275
      %v277 = vld [vmem:[%s260] sm:$0xff]
      %v278 = vld [vmem:[%s260 + $0x8] sm:$0xff]
      %v279 = vld [vmem:[%s1] sm:$0xff]
      %v280 = vld [vmem:[%s1 + $0x8] sm:$0xff]
      %v281 = vld [vmem:[%s1 + $0x10] sm:$0xff]
      %v282 = vld [vmem:[%s1 + $0x18] sm:$0xff]
      %v283 = vld [vmem:[%s1 + $0x20] sm:$0xff]
      %v284 = vld [vmem:[%s1 + $0x28] sm:$0xff]
      %v285 = vld [vmem:[%s1 + $0x30] sm:$0x3f]
      %v286 = vld [vmem:[%s2] sm:$0xff]
      %v287 = vld [vmem:[%s2 + $0x8] sm:$0xff]
      %v288 = vld [vmem:[%s2 + $0x10] sm:$0xff]
      %v289 = vld [vmem:[%s2 + $0x18] sm:$0xff]
      %v290 = vld [vmem:[%s2 + $0x20] sm:$0xff]
      %v291 = vld [vmem:[%s2 + $0x28] sm:$0xff]
      %v292 = vld [vmem:[%s2 + $0x30] sm:$0x3f]
      %294 = vset.pattern.permute.xlu0 0
      %295 = vperm.xlu0 %294, %v286
      %v296 = vpop.permute.xlu0 %295
      %299 = vset.pattern.permute.xlu0 0
      %300 = vperm.xlu0 %299, %v287
      %v301 = vpop.permute.xlu0 %300
      %304 = vset.pattern.permute.xlu0 0
      %305 = vperm.xlu0 %304, %v288
      %v306 = vpop.permute.xlu0 %305
      %309 = vset.pattern.permute.xlu0 0
      %310 = vperm.xlu0 %309, %v289
      %v311 = vpop.permute.xlu0 %310
      %314 = vset.pattern.permute.xlu0 0
      %315 = vperm.xlu0 %314, %v290
      %v316 = vpop.permute.xlu0 %315
      %319 = vset.pattern.permute.xlu0 0
      %320 = vperm.xlu0 %319, %v291
      %v321 = vpop.permute.xlu0 %320
      %324 = vset.pattern.permute.xlu0 0
      %325 = vperm.xlu0 %324, %v292
      %v326 = vpop.permute.xlu0 %325
      %vm328 = vcmask 130048
      %v330 = vsel %vm328, %v279, 0
      %v333 = vsel %vm328, %v280, 0
      %v336 = vsel %vm328, %v281, 0
      %v339 = vsel %vm328, %v282, 0
      %v342 = vsel %vm328, %v283, 0
      %v345 = vsel %vm328, %v284, 0
      %v348 = vsel %vm328, %v285, 0
      %350 = vmatpush.msra.mxu0 0.0
      %351 = vmatpush.msra.mxu0 0.0
      %352 = vmatpush.msra.mxu0 0.0
      %353 = vmatpush.msra.mxu0 0.0
      %354 = vmatpush.msra.mxu0 0.0
      %355 = vmatpush.msra.mxu0 0.0
      %356 = vmatpush.msra.mxu0 0.0
      %357 = vmatpush.msra.mxu0 0.0
      %358 = vmatpush.msra.mxu0 0.0
      %359 = vmatpush.msra.mxu0 0.0
      %360 = vmatpush.msra.mxu0 0.0
      %361 = vmatpush.msra.mxu0 0.0
      %362 = vmatpush.msra.mxu0 0.0
      %363 = vmatpush.msra.mxu0 0.0
      %364 = vmatpush.msra.mxu0 %v278
      %365 = vmatpush.msra.mxu0 %v277
      %366 = vmatmul.f32.gmra.mxu0 %v330
      %v367 = vpop.f32.mrf.mxu0
      %v368 = vadd.f32 %v296, %v367
      %369 = vmatmul.f32.gmra.mxu0 %v333
      %v370 = vpop.f32.mrf.mxu0
      %v371 = vadd.f32 %v301, %v370
      %372 = vmatmul.f32.gmra.mxu0 %v336
      %v373 = vpop.f32.mrf.mxu0
      %v374 = vadd.f32 %v306, %v373
      %375 = vmatmul.f32.gmra.mxu0 %v339
      %v376 = vpop.f32.mrf.mxu0
      %v377 = vadd.f32 %v311, %v376
      %378 = vmatmul.f32.gmra.mxu0 %v342
      %v379 = vpop.f32.mrf.mxu0
      %v380 = vadd.f32 %v316, %v379
      %381 = vmatmul.f32.gmra.mxu0 %v345
      %v382 = vpop.f32.mrf.mxu0
      %v383 = vadd.f32 %v321, %v382
      %384 = vmatmul.f32.gmra.mxu0 %v348
      %v385 = vpop.f32.mrf.mxu0
      %v386 = vadd.f32 %v326, %v385
      %387 = vdwg.mxu0
      %388 = vst.msk [vmem:[%s268] sm:$0xff] %vm328, %v368
      %389 = vst.msk [vmem:[%s268 + $0x8] sm:$0xff] %vm328, %v371
      %390 = vst.msk [vmem:[%s268 + $0x10] sm:$0xff] %vm328, %v374
      %391 = vst.msk [vmem:[%s268 + $0x18] sm:$0xff] %vm328, %v377
      %392 = vst.msk [vmem:[%s268 + $0x20] sm:$0xff] %vm328, %v380
      %393 = vst.msk [vmem:[%s268 + $0x28] sm:$0xff] %vm328, %v383
      %vm394 = vcmask 128000
      %395 = vst.msk [vmem:[%s268 + $0x30] sm:$0x3f] %vm394, %v386
      %v396 = vmul.f32 %v368, 0.5
      %v397 = vmul.f32 %v371, 0.5
      %v398 = vmul.f32 %v374, 0.5
      %v399 = vmul.f32 %v377, 0.5
      %v400 = vmul.f32 %v380, 0.5
      %v401 = vmul.f32 %v383, 0.5
      %v402 = vmul.f32 %v386, 0.5
      %v403 = vtanh.pop %v396
      %v404 = vtanh.pop %v397
      %v405 = vtanh.pop %v398
      %v406 = vtanh.pop %v399
      %v407 = vtanh.pop %v400
      %v408 = vtanh.pop %v401
      %v409 = vtanh.pop %v402
      %v410 = vmul.f32 %v403, 0.5
      %v411 = vmul.f32 %v404, 0.5
      %v412 = vmul.f32 %v405, 0.5
      %v413 = vmul.f32 %v406, 0.5
      %v414 = vmul.f32 %v407, 0.5
      %v415 = vmul.f32 %v408, 0.5
      %v416 = vmul.f32 %v409, 0.5
      %v417 = vadd.f32 %v410, 0.5
      %v418 = vadd.f32 %v411, 0.5
      %v419 = vadd.f32 %v412, 0.5
      %v420 = vadd.f32 %v413, 0.5
      %v421 = vadd.f32 %v414, 0.5
      %v422 = vadd.f32 %v415, 0.5
      %v423 = vadd.f32 %v416, 0.5
      %v424 = vlaneseq
      %v425 = vand.u32 %v424, 127
      %v426 = vcvt.s32.f32 %v425
      %s427 = smul.u32 %s22, 16
      %s428 = scvt.s32.f32 %s427
      %v429 = vstv %s428
      %v430 = vadd.f32 %v426, %v429
      %v431 = vrcp.pop 4.0
      %v432 = vmul.f32 4.0, %v431
      %v433 = vsub.f32 1.0, %v432
      %v434 = vmul.f32 %v431, %v433
      %v435 = vadd.f32 %v431, %v434
      %vm436 = vweird.f32 %v431
      %v437 = vsel %vm436, %v431, %v435
      %v438 = vmul.f32 %v430, %v437
      %v439 = vfloor.f32 %v438
      %v440 = vmul.f32 %v439, 4.0
      %v441 = vsub.f32 %v430, %v440
      %v442 = vmul.f32 %v441, 32.0
      %v443 = vsub.f32 %v442, 16.0
      %v444 = vmul.f32 %v439, 32.0
      %v445 = vsub.f32 %v444, 16.0
      %v446 = vlaneseq
      %v447 = vshrl.u32 %v446, 7
      %v448 = vadd.s32 %v447, 8
      %v449 = vadd.s32 %v447, 16
      %v450 = vadd.s32 %v447, 24
      %v451 = vadd.s32 %v447, 32
      %v452 = vadd.s32 %v447, 40
      %v453 = vadd.s32 %v447, 48
      %vm454 = vcmp.lt.s32.totalorder %v447, 3
      %vm455 = vcmp.lt.s32.totalorder %v448, 3
      %vm456 = vcmp.lt.s32.totalorder %v449, 3
      %vm457 = vcmp.lt.s32.totalorder %v450, 3
      %vm458 = vcmp.lt.s32.totalorder %v451, 3
      %vm459 = vcmp.lt.s32.totalorder %v452, 3
      %vm460 = vcmp.lt.s32.totalorder %v453, 3
      %vm461 = vcmp.lt.s32.totalorder %v447, 6
      %vm462 = vcmp.lt.s32.totalorder %v448, 6
      %vm463 = vcmp.lt.s32.totalorder %v449, 6
      %vm464 = vcmp.lt.s32.totalorder %v450, 6
      %vm465 = vcmp.lt.s32.totalorder %v451, 6
      %vm466 = vcmp.lt.s32.totalorder %v452, 6
      %vm467 = vcmp.lt.s32.totalorder %v453, 6
      %vm468 = vcmp.ge.s32.totalorder %v447, 6
      %vm469 = vcmp.ge.s32.totalorder %v448, 6
      %vm470 = vcmp.ge.s32.totalorder %v449, 6
      %vm471 = vcmp.ge.s32.totalorder %v450, 6
      %vm472 = vcmp.ge.s32.totalorder %v451, 6
      %vm473 = vcmp.ge.s32.totalorder %v452, 6
      %vm474 = vcmp.ge.s32.totalorder %v453, 6
      %vm475 = vcmp.lt.s32.totalorder %v447, 12
      %vm476 = vcmp.lt.s32.totalorder %v448, 12
      %vm477 = vcmp.lt.s32.totalorder %v449, 12
      %vm478 = vcmp.lt.s32.totalorder %v450, 12
      %vm479 = vcmp.lt.s32.totalorder %v451, 12
      %vm480 = vcmp.lt.s32.totalorder %v452, 12
      %vm481 = vcmp.lt.s32.totalorder %v453, 12
      %vm482 = vmand %vm468, %vm475
      %vm483 = vmand %vm469, %vm476
      %vm484 = vmand %vm470, %vm477
      %vm485 = vmand %vm471, %vm478
      %vm486 = vmand %vm472, %vm479
      %vm487 = vmand %vm473, %vm480
      %vm488 = vmand %vm474, %vm481
      %v489 = vsel %vm454, 1, 0
      %v490 = vsel %vm455, 1, 0
      %v491 = vsel %vm456, 1, 0
      %v492 = vsel %vm457, 1, 0
      %v493 = vsel %vm458, 1, 0
      %v494 = vsel %vm459, 1, 0
      %v495 = vsel %vm460, 1, 0
      %vm496 = vcmp.eq.s32.totalorder %v489, 1
      %vm497 = vcmp.eq.s32.totalorder %v490, 1
      %vm498 = vcmp.eq.s32.totalorder %v491, 1
      %vm499 = vcmp.eq.s32.totalorder %v492, 1
      %vm500 = vcmp.eq.s32.totalorder %v493, 1
      %vm501 = vcmp.eq.s32.totalorder %v494, 1
      %vm502 = vcmp.eq.s32.totalorder %v495, 1
      %v503 = vsel %vm496, %v443, %v445
      %v504 = vsel %vm497, %v443, %v445
      %v505 = vsel %vm498, %v443, %v445
      %v506 = vsel %vm499, %v443, %v445
      %v507 = vsel %vm500, %v443, %v445
      %v508 = vsel %vm501, %v443, %v445
      %v509 = vsel %vm502, %v443, %v445
      %v510 = vmul.f32 %v417, 64.0
      %v511 = vmul.f32 %v418, 64.0
      %v512 = vmul.f32 %v419, 64.0
      %v513 = vmul.f32 %v420, 64.0
      %v514 = vmul.f32 %v421, 64.0
      %v515 = vmul.f32 %v422, 64.0
      %v516 = vmul.f32 %v423, 64.0
      %v517 = vadd.f32 %v510, %v503
      %v518 = vadd.f32 %v511, %v504
      %v519 = vadd.f32 %v512, %v505
      %v520 = vadd.f32 %v513, %v506
      %v521 = vadd.f32 %v514, %v507
      %v522 = vadd.f32 %v515, %v508
      %v523 = vadd.f32 %v516, %v509
      %v524 = vmul.f32 %v417, %v417
      %v525 = vmul.f32 %v418, %v418
      %v526 = vmul.f32 %v419, %v419
      %v527 = vmul.f32 %v420, %v420
      %v528 = vmul.f32 %v421, %v421
      %v529 = vmul.f32 %v422, %v422
      %v530 = vmul.f32 %v423, %v423
      %v531 = vld [vmem:[%s3] sm:$0xff]
      %v532 = vld [vmem:[%s3 + $0x8] sm:$0xff]
      %v533 = vld [vmem:[%s3 + $0x10] sm:$0xff]
      %v534 = vld [vmem:[%s3 + $0x18] sm:$0xff]
      %v535 = vld [vmem:[%s3 + $0x20] sm:$0xff]
      %v536 = vld [vmem:[%s3 + $0x28] sm:$0xff]
      %v537 = vld [vmem:[%s3 + $0x30] sm:$0x3f]
      %539 = vset.pattern.permute.xlu0 0
      %540 = vperm.xlu0 %539, %v531
      %v541 = vpop.permute.xlu0 %540
      %544 = vset.pattern.permute.xlu0 0
      %545 = vperm.xlu0 %544, %v532
      %v546 = vpop.permute.xlu0 %545
      %549 = vset.pattern.permute.xlu0 0
      %550 = vperm.xlu0 %549, %v533
      %v551 = vpop.permute.xlu0 %550
      %554 = vset.pattern.permute.xlu0 0
      %555 = vperm.xlu0 %554, %v534
      %v556 = vpop.permute.xlu0 %555
      %559 = vset.pattern.permute.xlu0 0
      %560 = vperm.xlu0 %559, %v535
      %v561 = vpop.permute.xlu0 %560
      %564 = vset.pattern.permute.xlu0 0
      %565 = vperm.xlu0 %564, %v536
      %v566 = vpop.permute.xlu0 %565
      %569 = vset.pattern.permute.xlu0 0
      %570 = vperm.xlu0 %569, %v537
      %v571 = vpop.permute.xlu0 %570
      %v573 = vmul.f32 %v524, %v541
      %v574 = vmul.f32 %v525, %v546
      %v575 = vmul.f32 %v526, %v551
      %v576 = vmul.f32 %v527, %v556
      %v577 = vmul.f32 %v528, %v561
      %v578 = vmul.f32 %v529, %v566
      %v579 = vmul.f32 %v530, %v571
      %v580 = vsel %vm482, 1, 0
      %v581 = vsel %vm483, 1, 0
      %v582 = vsel %vm484, 1, 0
      %v583 = vsel %vm485, 1, 0
      %v584 = vsel %vm486, 1, 0
      %v585 = vsel %vm487, 1, 0
      %v586 = vsel %vm488, 1, 0
      %vm587 = vcmp.eq.s32.totalorder %v580, 1
      %vm588 = vcmp.eq.s32.totalorder %v581, 1
      %vm589 = vcmp.eq.s32.totalorder %v582, 1
      %vm590 = vcmp.eq.s32.totalorder %v583, 1
      %vm591 = vcmp.eq.s32.totalorder %v584, 1
      %vm592 = vcmp.eq.s32.totalorder %v585, 1
      %vm593 = vcmp.eq.s32.totalorder %v586, 1
      %v594 = vsel %vm587, %v573, %v417
      %v595 = vsel %vm588, %v574, %v418
      %v596 = vsel %vm589, %v575, %v419
      %v597 = vsel %vm590, %v576, %v420
      %v598 = vsel %vm591, %v577, %v421
      %v599 = vsel %vm592, %v578, %v422
      %v600 = vsel %vm593, %v579, %v423
      %v601 = vsel %vm461, 1, 0
      %v602 = vsel %vm462, 1, 0
      %v603 = vsel %vm463, 1, 0
      %v604 = vsel %vm464, 1, 0
      %v605 = vsel %vm465, 1, 0
      %v606 = vsel %vm466, 1, 0
      %v607 = vsel %vm467, 1, 0
      %vm608 = vcmp.eq.s32.totalorder %v601, 1
      %vm609 = vcmp.eq.s32.totalorder %v602, 1
      %vm610 = vcmp.eq.s32.totalorder %v603, 1
      %vm611 = vcmp.eq.s32.totalorder %v604, 1
      %vm612 = vcmp.eq.s32.totalorder %v605, 1
      %vm613 = vcmp.eq.s32.totalorder %v606, 1
      %vm614 = vcmp.eq.s32.totalorder %v607, 1
      %v615 = vsel %vm608, %v517, %v594
      %v616 = vsel %vm609, %v518, %v595
      %v617 = vsel %vm610, %v519, %v596
      %v618 = vsel %vm611, %v520, %v597
      %v619 = vsel %vm612, %v521, %v598
      %v620 = vsel %vm613, %v522, %v599
      %v621 = vsel %vm614, %v523, %v600
      %622 = vst.msk [vmem:[%s276] sm:$0xff] %vm328, %v615
      %623 = vst.msk [vmem:[%s276 + $0x8] sm:$0xff] %vm328, %v616
      %624 = vst.msk [vmem:[%s276 + $0x10] sm:$0xff] %vm328, %v617
      %625 = vst.msk [vmem:[%s276 + $0x18] sm:$0xff] %vm328, %v618
      %626 = vst.msk [vmem:[%s276 + $0x20] sm:$0xff] %vm328, %v619
      %627 = vst.msk [vmem:[%s276 + $0x28] sm:$0xff] %vm328, %v620
      %628 = vst.msk [vmem:[%s276 + $0x30] sm:$0x3f] %vm394, %v621
      %p629 = scmp.lt.s32.totalorder %s21, 1
      %s630 = scalar_select %p629, %s21, 1
      %p631 = scmp.lt.s32.totalorder %s22, 0
      %s632 = scalar_select %p631, %s22, 0
      %s633 = smul.addr %s630, 7
      %s634 = sadd.s32 %s632, %s633
      %s635 = smul.addr %s634, 8
      %s636 = scalar_lea.vmem %s4, %s635
      %p637 = scmp.lt.s32.totalorder %s21, 1
      %s638 = scalar_select %p637, %s21, 1
      %p639 = scmp.lt.s32.totalorder %s22, 0
      %s640 = scalar_select %p639, %s22, 0
      %s641 = smul.addr %s638, 7
      %s642 = sadd.s32 %s640, %s641
      %s643 = smul.addr %s642, 8
      %s644 = scalar_lea.vmem %s5, %s643
      // Predicated region
      $region37: #{detect_forward.5} parent=35 // pred_check
        %p645 = pneg %p140
      $region38: #{detect_forward.5} parent=35 // pred_check_branch
        %647 = sbr.rel (%p645) target = $region40
      $region39: #{detect_forward.5} parent=35 // pred_region
        _
      $region40: #{detect_forward.5} parent=35 // pred_fallthru
        _
      // Predicated region
      $region41: #{detect_forward.5} parent=35 // pred_check
        %p648 = pneg %p168
      $region42: #{detect_forward.5} parent=35 // pred_check_branch
        %650 = sbr.rel (%p648) target = $region44
      $region43: #{detect_forward.5} parent=35 // pred_region
        _
      $region44: #{detect_forward.5} parent=35 // pred_fallthru
        _
    $region36: #{detect_forward.5} parent=5 // pred_fallthru
      _
    %p651 = scmp.le.s32.totalorder 2, %s12
    // Predicated region
    $region45: #{detect_forward.5} parent=5 // pred_check
      %p652 = pneg %p651
    $region46: #{detect_forward.5} parent=5 // pred_check_branch
      %654 = sbr.rel (%p652) target = $region48
    $region47: #{detect_forward.5} parent=5 // pred_region
      %s655 = ssub.s32 %s12, 2
      // Predicated region
      $region49: #{detect_forward.5} parent=47 // pred_check
        %p656 = pneg %p146
      $region50: #{detect_forward.5} parent=47 // pred_check_branch
        %658 = sbr.rel (%p656) target = $region52
      $region51: #{detect_forward.5} parent=47 // pred_region
        %p659 = scmp.lt.s32.totalorder %s23, 1
        %s660 = scalar_select %p659, %s23, 1
        %p661 = scmp.lt.s32.totalorder %s24, 0
        %s662 = scalar_select %p661, %s24, 0
        %s663 = smul.addr %s660, 7
        %s664 = sadd.s32 %s662, %s663
        %s665 = smul.addr %s664, 8
        %s666 = scalar_lea.vmem %s4, %s665
      $region52: #{detect_forward.5} parent=47 // pred_fallthru
        _
      // Predicated region
      $region53: #{detect_forward.5} parent=47 // pred_check
        %p667 = pneg %p174
      $region54: #{detect_forward.5} parent=47 // pred_check_branch
        %669 = sbr.rel (%p667) target = $region56
      $region55: #{detect_forward.5} parent=47 // pred_region
        %p670 = scmp.lt.s32.totalorder %s23, 1
        %s671 = scalar_select %p670, %s23, 1
        %p672 = scmp.lt.s32.totalorder %s24, 0
        %s673 = scalar_select %p672, %s24, 0
        %s674 = smul.addr %s671, 7
        %s675 = sadd.s32 %s673, %s674
        %s676 = smul.addr %s675, 8
        %s677 = scalar_lea.vmem %s5, %s676
      $region56: #{detect_forward.5} parent=47 // pred_fallthru
        _
    $region48: #{detect_forward.5} parent=5 // pred_fallthru
      _
  $region6: #{detect_forward.5} parent=0 // loop_footer
    %s16 = sadd.s32 1, %s12
  $region7: #{detect_forward.5} parent=0 // loop_footer_branch
    %11 = sbr.rel target = $region3
  $region8: #{detect_forward.5} parent=0 // loop_exit
    _

</llo_original>
